<compile_context>
chip_gen: v5e
topology: v5e:2x2
jax: 0.10.0
libtpu: 0.0.40
codegen_flags: <defaults>
</compile_context>

<pallas_src>
import jax
import jax.numpy as jnp
from jax.experimental import pallas as pl
from jax.experimental.pallas import tpu as pltpu

INPUT_DIM = 28 * 28          # 784 == full last dim of x -> un-padded block is legal
H1, H2, H3 = 512, 256, 128
OUTPUT_DIM = 10
OUT_PAD = 128                # lane-dense output width
NEG_BIG = -1e30              # bias for padded logit columns (exp() -> exactly 0)

MAX_TILE_B = 512             # 512-row tiles measured near the HBM roofline
MIN_SPLIT_B = 256            # from here on force >= 2 grid steps (v7x: 2 TCs)


def _round_up(x, m):
    return ((x + m - 1) // m) * m


def _choose_tiling(batch):
    """Pick (b_pad, tile_b): b_pad % tile_b == 0, tile_b % 16 == 0, padding
    waste < one tile, and an even number of grid steps once the batch is big
    enough to feed both v7x TensorCores."""
    b16 = _round_up(batch, 16)
    if b16 < MIN_SPLIT_B:
        return b16, b16                          # single tile (latency regime)
    n_tiles = max(2, pl.cdiv(b16, MAX_TILE_B))
    if n_tiles % 2:
        n_tiles += 1                             # even -> balanced megacore split
    tile_b = _round_up(pl.cdiv(b16, n_tiles), 16)
    return tile_b * n_tiles, tile_b


def mlp_kernel(x_ref, w1_ref, b1_ref, w2_ref, b2_ref, w3_ref, b3_ref,
               w4_ref, b4_ref, out_ref):
    # In-kernel bf16 cast of the x tile (saves a full HBM pad+cast pass).
    x = x_ref[...].astype(jnp.bfloat16)
    # fc1 + relu (bf16 operands, f32 MXU accumulation)
    h = jnp.dot(x, w1_ref[...], preferred_element_type=jnp.float32)
    h = jnp.maximum(h + b1_ref[...], 0.0).astype(jnp.bfloat16)
    # fc2 + relu
    h = jnp.dot(h, w2_ref[...], preferred_element_type=jnp.float32)
    h = jnp.maximum(h + b2_ref[...], 0.0).astype(jnp.bfloat16)
    # fc3 + relu
    h = jnp.dot(h, w3_ref[...], preferred_element_type=jnp.float32)
    h = jnp.maximum(h + b3_ref[...], 0.0).astype(jnp.bfloat16)
    # fc4: 128-wide padded logits; padded columns carry a -1e30 bias so they
    # contribute exp(...) == 0 to the softmax denominator.
    logits = jnp.dot(h, w4_ref[...], preferred_element_type=jnp.float32)
    logits = logits + b4_ref[...]
    # log_softmax over the last dim (max-shift for stability)
    m = jnp.max(logits, axis=-1, keepdims=True)
    shifted = logits - m
    lse = jnp.log(jnp.sum(jnp.exp(shifted), axis=-1, keepdims=True))
    out_ref[...] = shifted - lse


def init_params(key):
    """nn.Linear-style init, weights stored pre-transposed (in, out), f32."""
    dims = [(INPUT_DIM, H1), (H1, H2), (H2, H3), (H3, OUTPUT_DIM)]
    params = []
    for fan_in, fan_out in dims:
        key, kw, kb = jax.random.split(key, 3)
        bound = 1.0 / (fan_in ** 0.5)
        w_t = jax.random.uniform(kw, (fan_in, fan_out), jnp.float32, -bound, bound)
        b = jax.random.uniform(kb, (1, fan_out), jnp.float32, -bound, bound)
        params.append((w_t, b))
    return params


def pack_params(params):
    """Cast weights to bf16 (no K padding); pad fc4 out dim 10->128.
    Biases stay f32; padded logit columns get a -1e30 bias."""
    (w1, b1), (w2, b2), (w3, b3), (w4, b4) = params
    w1p = w1.astype(jnp.bfloat16)                                  # (784, 512)
    w2p = w2.astype(jnp.bfloat16)
    w3p = w3.astype(jnp.bfloat16)
    w4p = jnp.pad(w4, ((0, 0), (0, OUT_PAD - OUTPUT_DIM))).astype(jnp.bfloat16)
    b4p = jnp.concatenate(
        [b4, jnp.full((1, OUT_PAD - OUTPUT_DIM), NEG_BIG, jnp.float32)], axis=1)
    # TODO(synk): for tiny-batch latency, int8/fp8 weight quantization or a
    # cross-pallas_call weight prefetch (P10) would hide the ~1.2 MB weight DMA.
    return (w1p, b1, w2p, b2, w3p, b3, w4p, b4p)


def _resident(shape):
    """Constant index_map + single buffer: fetched once, stays VMEM-resident."""
    return pl.BlockSpec(shape, lambda i: (0, 0),
                        pipeline_mode=pl.Buffered(buffer_count=1))


@jax.jit
def net_forward(x, packed):
    """x: (B, 1, 28, 28) float32 -> (B, 10) f32 log-probabilities."""
    w1, b1, w2, b2, w3, b3, w4, b4 = packed
    B = x.shape[0]
    x2d = x.reshape(B, -1).astype(jnp.float32)          # torch .view(B, -1); stays f32
    b_pad, tile_b = _choose_tiling(B)
    if b_pad != B:
        x2d = jnp.pad(x2d, ((0, b_pad - B), (0, 0)))    # minimal zero-padding

    grid = (b_pad // tile_b,)

    weight_bytes = sum(int(a.size) * a.dtype.itemsize
                       for a in (w1, b1, w2, b2, w3, b3, w4, b4))
    cost = pl.CostEstimate(
        flops=2 * b_pad * (INPUT_DIM * H1 + H1 * H2 + H2 * H3 + H3 * OUT_PAD),
        transcendentals=b_pad * (OUT_PAD + 1),
        bytes_accessed=weight_bytes + int(x2d.size) * 4 + b_pad * OUT_PAD * 4,
    )

    out = pl.pallas_call(
        mlp_kernel,
        out_shape=jax.ShapeDtypeStruct((b_pad, OUT_PAD), jnp.float32),
        grid=grid,
        in_specs=[
            # x tile: (tile_b, 784) f32, auto-pipelined across the batch grid.
            # (sweep pipeline_mode=pl.Buffered(3) here if profiling on v6e
            #  shows exposed DMA after enlarging tile_b)
            pl.BlockSpec((tile_b, INPUT_DIM), lambda i: (i, 0)),
            _resident((INPUT_DIM, H1)),   # w1  (VMEM-resident, single buffer)
            _resident((1, H1)),           # b1
            _resident((H1, H2)),          # w2
            _resident((1, H2)),           # b2
            _resident((H2, H3)),          # w3
            _resident((1, H3)),           # b3
            _resident((H3, OUT_PAD)),     # w4
            _resident((1, OUT_PAD)),      # b4
        ],
        out_specs=pl.BlockSpec((tile_b, OUT_PAD), lambda i: (i, 0)),
        compiler_params=pltpu.CompilerParams(
            dimension_semantics=("parallel",)),
        cost_estimate=cost,
    )(x2d, w1, b1, w2, b2, w3, b3, w4, b4)

    return out[:B, :OUTPUT_DIM]


def net_forward_ref(x, params):
    """Pure-JAX f32 reference (torch semantics) for validation."""
    h = x.reshape(x.shape[0], -1).astype(jnp.float32)
    (w1, b1), (w2, b2), (w3, b3), (w4, b4) = params
    h = jnp.maximum(h @ w1 + b1, 0.0)
    h = jnp.maximum(h @ w2 + b2, 0.0)
    h = jnp.maximum(h @ w3 + b3, 0.0)
    logits = h @ w4 + b4
    return jax.nn.log_softmax(logits, axis=-1)


if __name__ == "__main__":
    key = jax.random.PRNGKey(0)
    k_params, k_x = jax.random.split(key)
    params = init_params(k_params)
    packed = pack_params(params)

    batch = 8
    x = jax.random.normal(k_x, (batch, 1, 28, 28), jnp.float32)

    out = net_forward(x, packed)
    out = jax.block_until_ready(out)

    assert out.shape == (batch, OUTPUT_DIM)
    # rows of log_softmax must exponentiate-and-sum to ~1
    assert jnp.allclose(jnp.sum(jnp.exp(out), axis=1), 1.0, atol=1e-4)
    # match the f32 reference within bf16-matmul tolerance
    ref = net_forward_ref(x, params)
    assert jnp.allclose(out, ref, atol=0.2), float(jnp.max(jnp.abs(out - ref)))
    print("KERNEL_OK")
</pallas_src>

<mosaic_0001>
module attributes {stable_mosaic.version = 11 : i64} {
  func.func @mlp_kernel(%arg0: i32, %arg1: memref<16x784xf32, #tpu.memory_space<vmem>>, %arg2: memref<784x512xbf16, #tpu.memory_space<vmem>>, %arg3: memref<1x512xf32, #tpu.memory_space<vmem>>, %arg4: memref<512x256xbf16, #tpu.memory_space<vmem>>, %arg5: memref<1x256xf32, #tpu.memory_space<vmem>>, %arg6: memref<256x128xbf16, #tpu.memory_space<vmem>>, %arg7: memref<1x128xf32, #tpu.memory_space<vmem>>, %arg8: memref<128x128xbf16, #tpu.memory_space<vmem>>, %arg9: memref<1x128xf32, #tpu.memory_space<vmem>>, %arg10: memref<16x128xf32, #tpu.memory_space<vmem>>) attributes {dimension_semantics = [#tpu.dimension_semantics<parallel>], iteration_bounds = array<i64: 1>, scalar_prefetch = 0 : i64, scratch_operands = 0 : i64, tpu.core_type = #tpu.core_type<tc>, window_params = [{transform_indices = @transform_0, window_bounds = array<i64: 16, 784>}, {pipeline_mode = #tpu.pipeline_mode<synchronous>, transform_indices = @transform_1, window_bounds = array<i64: 784, 512>}, {pipeline_mode = #tpu.pipeline_mode<synchronous>, transform_indices = @transform_2, window_bounds = array<i64: 1, 512>}, {pipeline_mode = #tpu.pipeline_mode<synchronous>, transform_indices = @transform_3, window_bounds = array<i64: 512, 256>}, {pipeline_mode = #tpu.pipeline_mode<synchronous>, transform_indices = @transform_4, window_bounds = array<i64: 1, 256>}, {pipeline_mode = #tpu.pipeline_mode<synchronous>, transform_indices = @transform_5, window_bounds = array<i64: 256, 128>}, {pipeline_mode = #tpu.pipeline_mode<synchronous>, transform_indices = @transform_6, window_bounds = array<i64: 1, 128>}, {pipeline_mode = #tpu.pipeline_mode<synchronous>, transform_indices = @transform_7, window_bounds = array<i64: 128, 128>}, {pipeline_mode = #tpu.pipeline_mode<synchronous>, transform_indices = @transform_8, window_bounds = array<i64: 1, 128>}, {transform_indices = @transform_9, window_bounds = array<i64: 16, 128>}]} {
    %c0 = arith.constant 0 : index
    %c0_0 = arith.constant 0 : index
    %0 = vector.load %arg1[%c0, %c0_0] : memref<16x784xf32, #tpu.memory_space<vmem>>, vector<16x784xf32>
    %1 = arith.truncf %0 : vector<16x784xf32> to vector<16x784xbf16>
    %c0_1 = arith.constant 0 : index
    %c0_2 = arith.constant 0 : index
    %2 = vector.load %arg2[%c0_1, %c0_2] : memref<784x512xbf16, #tpu.memory_space<vmem>>, vector<784x512xbf16>
    %cst = arith.constant dense<0.000000e+00> : vector<16x512xf32>
    %3 = tpu.matmul %1, %2, %cst {dimension_numbers = #tpu.dot_dimension_numbers<[1], [0], [0], [1], [0, 0, 1, 1], [], []>} : vector<16x784xbf16>, vector<784x512xbf16>, vector<16x512xf32> -> vector<16x512xf32>
    %c0_3 = arith.constant 0 : index
    %c0_4 = arith.constant 0 : index
    %4 = vector.load %arg3[%c0_3, %c0_4] : memref<1x512xf32, #tpu.memory_space<vmem>>, vector<1x512xf32>
    %5 = vector.broadcast %4 : vector<1x512xf32> to vector<16x512xf32>
    %6 = arith.addf %3, %5 : vector<16x512xf32>
    %cst_5 = arith.constant 0.000000e+00 : f32
    %7 = vector.broadcast %cst_5 : f32 to vector<16x512xf32>
    %8 = arith.maximumf %6, %7 : vector<16x512xf32>
    %9 = arith.truncf %8 : vector<16x512xf32> to vector<16x512xbf16>
    %c0_6 = arith.constant 0 : index
    %c0_7 = arith.constant 0 : index
    %10 = vector.load %arg4[%c0_6, %c0_7] : memref<512x256xbf16, #tpu.memory_space<vmem>>, vector<512x256xbf16>
    %cst_8 = arith.constant dense<0.000000e+00> : vector<16x256xf32>
    %11 = tpu.matmul %9, %10, %cst_8 {dimension_numbers = #tpu.dot_dimension_numbers<[1], [0], [0], [1], [0, 0, 1, 1], [], []>} : vector<16x512xbf16>, vector<512x256xbf16>, vector<16x256xf32> -> vector<16x256xf32>
    %c0_9 = arith.constant 0 : index
    %c0_10 = arith.constant 0 : index
    %12 = vector.load %arg5[%c0_9, %c0_10] : memref<1x256xf32, #tpu.memory_space<vmem>>, vector<1x256xf32>
    %13 = vector.broadcast %12 : vector<1x256xf32> to vector<16x256xf32>
    %14 = arith.addf %11, %13 : vector<16x256xf32>
    %cst_11 = arith.constant 0.000000e+00 : f32
    %15 = vector.broadcast %cst_11 : f32 to vector<16x256xf32>
    %16 = arith.maximumf %14, %15 : vector<16x256xf32>
    %17 = arith.truncf %16 : vector<16x256xf32> to vector<16x256xbf16>
    %c0_12 = arith.constant 0 : index
    %c0_13 = arith.constant 0 : index
    %18 = vector.load %arg6[%c0_12, %c0_13] : memref<256x128xbf16, #tpu.memory_space<vmem>>, vector<256x128xbf16>
    %cst_14 = arith.constant dense<0.000000e+00> : vector<16x128xf32>
    %19 = tpu.matmul %17, %18, %cst_14 {dimension_numbers = #tpu.dot_dimension_numbers<[1], [0], [0], [1], [0, 0, 1, 1], [], []>} : vector<16x256xbf16>, vector<256x128xbf16>, vector<16x128xf32> -> vector<16x128xf32>
    %c0_15 = arith.constant 0 : index
    %c0_16 = arith.constant 0 : index
    %20 = vector.load %arg7[%c0_15, %c0_16] : memref<1x128xf32, #tpu.memory_space<vmem>>, vector<1x128xf32>
    %21 = vector.broadcast %20 : vector<1x128xf32> to vector<16x128xf32>
    %22 = arith.addf %19, %21 : vector<16x128xf32>
    %cst_17 = arith.constant 0.000000e+00 : f32
    %23 = vector.broadcast %cst_17 : f32 to vector<16x128xf32>
    %24 = arith.maximumf %22, %23 : vector<16x128xf32>
    %25 = arith.truncf %24 : vector<16x128xf32> to vector<16x128xbf16>
    %c0_18 = arith.constant 0 : index
    %c0_19 = arith.constant 0 : index
    %26 = vector.load %arg8[%c0_18, %c0_19] : memref<128x128xbf16, #tpu.memory_space<vmem>>, vector<128x128xbf16>
    %cst_20 = arith.constant dense<0.000000e+00> : vector<16x128xf32>
    %27 = tpu.matmul %25, %26, %cst_20 {dimension_numbers = #tpu.dot_dimension_numbers<[1], [0], [0], [1], [0, 0, 1, 1], [], []>} : vector<16x128xbf16>, vector<128x128xbf16>, vector<16x128xf32> -> vector<16x128xf32>
    %c0_21 = arith.constant 0 : index
    %c0_22 = arith.constant 0 : index
    %28 = vector.load %arg9[%c0_21, %c0_22] : memref<1x128xf32, #tpu.memory_space<vmem>>, vector<1x128xf32>
    %29 = vector.broadcast %28 : vector<1x128xf32> to vector<16x128xf32>
    %30 = arith.addf %27, %29 : vector<16x128xf32>
    %cst_23 = arith.constant dense<0xFF800000> : vector<16xf32>
    %31 = vector.multi_reduction <maximumf>, %30, %cst_23 [1] : vector<16x128xf32> to vector<16xf32>
    %32 = vector.shape_cast %31 : vector<16xf32> to vector<16x1xf32>
    %33 = vector.broadcast %32 : vector<16x1xf32> to vector<16x128xf32>
    %34 = arith.subf %30, %33 : vector<16x128xf32>
    %35 = math.exp %34 : vector<16x128xf32>
    %cst_24 = arith.constant dense<0.000000e+00> : vector<16xf32>
    %36 = vector.multi_reduction <add>, %35, %cst_24 [1] : vector<16x128xf32> to vector<16xf32>
    %37 = vector.shape_cast %36 : vector<16xf32> to vector<16x1xf32>
    %38 = math.log %37 : vector<16x1xf32>
    %39 = vector.broadcast %38 : vector<16x1xf32> to vector<16x128xf32>
    %40 = arith.subf %34, %39 : vector<16x128xf32>
    %c0_25 = arith.constant 0 : index
    %c0_26 = arith.constant 0 : index
    %41 = vector.load %arg10[%c0_25, %c0_26] : memref<16x128xf32, #tpu.memory_space<vmem>>, vector<16x128xf32>
    tpu.vector_store %arg10[%c0_25, %c0_26], %40 {strides = array<i32>} : memref<16x128xf32, #tpu.memory_space<vmem>>, vector<16x128xf32>,
    return
  }
  func.func @transform_0(%arg0: i32) -> (i32, i32) {
    %c0_i32 = arith.constant 0 : i32
    %c0_i32_0 = arith.constant 0 : i32
    return %arg0, %c0_i32 : i32, i32
  }
  func.func @transform_1(%arg0: i32) -> (i32, i32) {
    %c0_i32 = arith.constant 0 : i32
    %c0_i32_0 = arith.constant 0 : i32
    %c0_i32_1 = arith.constant 0 : i32
    return %c0_i32, %c0_i32_0 : i32, i32
  }
  func.func @transform_2(%arg0: i32) -> (i32, i32) {
    %c0_i32 = arith.constant 0 : i32
    %c0_i32_0 = arith.constant 0 : i32
    %c0_i32_1 = arith.constant 0 : i32
    return %c0_i32, %c0_i32_0 : i32, i32
  }
  func.func @transform_3(%arg0: i32) -> (i32, i32) {
    %c0_i32 = arith.constant 0 : i32
    %c0_i32_0 = arith.constant 0 : i32
    %c0_i32_1 = arith.constant 0 : i32
    return %c0_i32, %c0_i32_0 : i32, i32
  }
  func.func @transform_4(%arg0: i32) -> (i32, i32) {
    %c0_i32 = arith.constant 0 : i32
    %c0_i32_0 = arith.constant 0 : i32
    %c0_i32_1 = arith.constant 0 : i32
    return %c0_i32, %c0_i32_0 : i32, i32
  }
  func.func @transform_5(%arg0: i32) -> (i32, i32) {
    %c0_i32 = arith.constant 0 : i32
    %c0_i32_0 = arith.constant 0 : i32
    %c0_i32_1 = arith.constant 0 : i32
    return %c0_i32, %c0_i32_0 : i32, i32
  }
  func.func @transform_6(%arg0: i32) -> (i32, i32) {
    %c0_i32 = arith.constant 0 : i32
    %c0_i32_0 = arith.constant 0 : i32
    %c0_i32_1 = arith.constant 0 : i32
    return %c0_i32, %c0_i32_0 : i32, i32
  }
  func.func @transform_7(%arg0: i32) -> (i32, i32) {
    %c0_i32 = arith.constant 0 : i32
    %c0_i32_0 = arith.constant 0 : i32
    %c0_i32_1 = arith.constant 0 : i32
    return %c0_i32, %c0_i32_0 : i32, i32
  }
  func.func @transform_8(%arg0: i32) -> (i32, i32) {
    %c0_i32 = arith.constant 0 : i32
    %c0_i32_0 = arith.constant 0 : i32
    %c0_i32_1 = arith.constant 0 : i32
    return %c0_i32, %c0_i32_0 : i32, i32
  }
  func.func @transform_9(%arg0: i32) -> (i32, i32) {
    %c0_i32 = arith.constant 0 : i32
    %c0_i32_0 = arith.constant 0 : i32
    return %arg0, %c0_i32 : i32, i32
  }
}

</mosaic_0001>

<llo_original>
// kernel: net_forward.1
$region0: #{net_forward.1}
  #allocation0 [shape = 'u32[]', space=smem, size = 0x4, offset = 0x4, fixed_abs, tag = 'smem constant byte address 0x4 - core index']
  #allocation1 [shape = 'u32[72,128]{1,0:T(1,128)}', space=vmem, size = 0x9000, scoped, tag = 'internal scratch']
  %s0 = inlined_call_operand.vmem [shape: f32[16,784], index: 0, kind: input, shape index: {}]
  %s1 = inlined_call_operand.hbm [shape: bf16[784,512], index: 1, kind: input, shape index: {}]
  %s2 = inlined_call_operand.vmem [shape: f32[1,512], index: 2, kind: input, shape index: {}]
  %s3 = inlined_call_operand.vmem [shape: bf16[512,256], index: 3, kind: input, shape index: {}]
  %s4 = inlined_call_operand.vmem [shape: f32[1,256], index: 4, kind: input, shape index: {}]
  %s5 = inlined_call_operand.vmem [shape: bf16[256,128], index: 5, kind: input, shape index: {}]
  %s6 = inlined_call_operand.vmem [shape: f32[1,128], index: 6, kind: input, shape index: {}]
  %s7 = inlined_call_operand.vmem [shape: bf16[128,128], index: 7, kind: input, shape index: {}]
  %s8 = inlined_call_operand.vmem [shape: f32[1,128], index: 8, kind: input, shape index: {}]
  %s9 = inlined_call_operand.vmem [shape: f32[16,128], index: 9, kind: output, shape index: {}]
  %s10 = sld [smem:[#allocation0]]
  $region50: #{net_forward.1} parent=0
    _
  %s12 = ssub.s32 1, %s10
  %s13 = scalar_select 0, %s12, %s10
  $region1: #{net_forward.1} parent=0
    #allocation2 [shape = 'u8[802816]{0}', space=vmem, size = 0xc4000, scoped, tag = 'input window, operand 1, single buffered']
    #allocation3 [shape = 's32[1]{0}', space=sflag, size = 0x4, scoped, tag = 'scoped memory for net_forward.1']
    %14 = vsyncpa [#allocation3], 0
    // Predicated region
    $region2: #{net_forward.1} parent=1 // pred_check
      _
    $region3: #{net_forward.1} parent=1 // pred_check_branch
      %16 = sbr.rel (0) target = $region5
    $region4: #{net_forward.1} parent=1 // pred_region
      _
    $region5: #{net_forward.1} parent=1 // pred_fallthru
      _
    // Predicated region
    $region6: #{net_forward.1} parent=1 // pred_check
      _
    $region7: #{net_forward.1} parent=1 // pred_check_branch
      %18 = sbr.rel (0) target = $region9
    $region8: #{net_forward.1} parent=1 // pred_region
      %20 = vsyncadd [#allocation3], 0
      %s21 = sshll.u32 %s1, 4
      %s22 = int_to_ptr.hbm [resolvable:$true] %s21
      %s23 = sshll.u32 [#allocation2], 4
      %s24 = int_to_ptr.vmem [resolvable:$true] %s23
      %29 = dma.hbm_to_vmem [thread:$0]  %s22, 25088, %s24, [#allocation3], 256, 256, 16
    $region9: #{net_forward.1} parent=1 // pred_fallthru
      _
    // Predicated region
    $region10: #{net_forward.1} parent=1 // pred_check
      _
    $region11: #{net_forward.1} parent=1 // pred_check_branch
      %31 = sbr.rel (0) target = $region13
    $region12: #{net_forward.1} parent=1 // pred_region
      _
    $region13: #{net_forward.1} parent=1 // pred_fallthru
      _
    // Predicated region
    $region14: #{net_forward.1} parent=1 // pred_check
      _
    $region15: #{net_forward.1} parent=1 // pred_check_branch
      %33 = sbr.rel (0) target = $region17
    $region16: #{net_forward.1} parent=1 // pred_region
      _
    $region17: #{net_forward.1} parent=1 // pred_fallthru
      _
    // Predicated region
    $region18: #{net_forward.1} parent=1 // pred_check
      _
    $region19: #{net_forward.1} parent=1 // pred_check_branch
      %35 = sbr.rel (0) target = $region21
    $region20: #{net_forward.1} parent=1 // pred_region
      _
    $region21: #{net_forward.1} parent=1 // pred_fallthru
      _
    // Predicated region
    $region22: #{net_forward.1} parent=1 // pred_check
      _
    $region23: #{net_forward.1} parent=1 // pred_check_branch
      %37 = sbr.rel (0) target = $region25
    $region24: #{net_forward.1} parent=1 // pred_region
      _
    $region25: #{net_forward.1} parent=1 // pred_fallthru
      _
    // Predicated region
    $region26: #{net_forward.1} parent=1 // pred_check
      _
    $region27: #{net_forward.1} parent=1 // pred_check_branch
      %39 = sbr.rel (0) target = $region29
    $region28: #{net_forward.1} parent=1 // pred_region
      _
    $region29: #{net_forward.1} parent=1 // pred_fallthru
      _
    // Predicated region
    $region30: #{net_forward.1} parent=1 // pred_check
      _
    $region31: #{net_forward.1} parent=1 // pred_check_branch
      %41 = sbr.rel (0) target = $region33
    $region32: #{net_forward.1} parent=1 // pred_region
      _
    $region33: #{net_forward.1} parent=1 // pred_fallthru
      _
    // Predicated region
    $region34: #{net_forward.1} parent=1 // pred_check
      _
    $region35: #{net_forward.1} parent=1 // pred_check_branch
      %43 = sbr.rel (0) target = $region37
    $region36: #{net_forward.1} parent=1 // pred_region
      _
    $region37: #{net_forward.1} parent=1 // pred_fallthru
      _
    // Predicated region
    $region38: #{net_forward.1} parent=1 // pred_check
      _
    $region39: #{net_forward.1} parent=1 // pred_check_branch
      %45 = sbr.rel (0) target = $region41
    $region40: #{net_forward.1} parent=1 // pred_region
      %47 = dma.done [#allocation3], 25088
    $region41: #{net_forward.1} parent=1 // pred_fallthru
      _
    %v49 = vld [vmem:[%s0] sm:$0xff]
    %v50 = vld [vmem:[%s0 + $0x8] sm:$0xff]
    %v51 = vld [vmem:[%s0 + $0x10] sm:$0xff]
    %v52 = vld [vmem:[%s0 + $0x18] sm:$0xff]
    %v53 = vld [vmem:[%s0 + $0x20] sm:$0xff]
    %v54 = vld [vmem:[%s0 + $0x28] sm:$0xff]
    %v55 = vld [vmem:[%s0 + $0x30] sm:$0xff]
    %v56 = vld [vmem:[%s0 + $0x38] sm:$0xff]
    %v57 = vld [vmem:[%s0 + $0x40] sm:$0xff]
    %v58 = vld [vmem:[%s0 + $0x48] sm:$0xff]
    %v59 = vld [vmem:[%s0 + $0x50] sm:$0xff]
    %v60 = vld [vmem:[%s0 + $0x58] sm:$0xff]
    %v61 = vld [vmem:[%s0 + $0x60] sm:$0xff]
    %v62 = vld [vmem:[%s0 + $0x68] sm:$0xff]
    %v63 = vpack.c.bf16 %v56, %v49
    %v64 = vpack.c.bf16 %v57, %v50
    %v65 = vpack.c.bf16 %v58, %v51
    %v66 = vpack.c.bf16 %v59, %v52
    %v67 = vpack.c.bf16 %v60, %v53
    %v68 = vpack.c.bf16 %v61, %v54
    %v69 = vpack.c.bf16 %v62, %v55
    %v70 = vld [vmem:[#allocation2] sm:$0xff]
    %v71 = vld [vmem:[#allocation2 + $0x8] sm:$0xff]
    %v72 = vld [vmem:[#allocation2 + $0x10] sm:$0xff]
    %v73 = vld [vmem:[#allocation2 + $0x18] sm:$0xff]
    %v74 = vld [vmem:[#allocation2 + $0x20] sm:$0xff]
    %v75 = vld [vmem:[#allocation2 + $0x28] sm:$0xff]
    %v76 = vld [vmem:[#allocation2 + $0x30] sm:$0xff]
    %v77 = vld [vmem:[#allocation2 + $0x38] sm:$0xff]
    %v78 = vld [vmem:[#allocation2 + $0x40] sm:$0xff]
    %v79 = vld [vmem:[#allocation2 + $0x48] sm:$0xff]
    %v80 = vld [vmem:[#allocation2 + $0x50] sm:$0xff]
    %v81 = vld [vmem:[#allocation2 + $0x58] sm:$0xff]
    %v82 = vld [vmem:[#allocation2 + $0x60] sm:$0xff]
    %v83 = vld [vmem:[#allocation2 + $0x68] sm:$0xff]
    %v84 = vld [vmem:[#allocation2 + $0x70] sm:$0xff]
    %v85 = vld [vmem:[#allocation2 + $0x78] sm:$0xff]
    %v86 = vld [vmem:[#allocation2 + $0x80] sm:$0xff]
    %v87 = vld [vmem:[#allocation2 + $0x88] sm:$0xff]
    %v88 = vld [vmem:[#allocation2 + $0x90] sm:$0xff]
    %v89 = vld [vmem:[#allocation2 + $0x98] sm:$0xff]
    %v90 = vld [vmem:[#allocation2 + $0xa0] sm:$0xff]
    %v91 = vld [vmem:[#allocation2 + $0xa8] sm:$0xff]
    %v92 = vld [vmem:[#allocation2 + $0xb0] sm:$0xff]
    %v93 = vld [vmem:[#allocation2 + $0xb8] sm:$0xff]
    %v94 = vld [vmem:[#allocation2 + $0xc0] sm:$0xff]
    %v95 = vld [vmem:[#allocation2 + $0xc8] sm:$0xff]
    %v96 = vld [vmem:[#allocation2 + $0xd0] sm:$0xff]
    %v97 = vld [vmem:[#allocation2 + $0xd8] sm:$0xff]
    %v98 = vld [vmem:[#allocation2 + $0xe0] sm:$0xff]
    %v99 = vld [vmem:[#allocation2 + $0xe8] sm:$0xff]
    %v100 = vld [vmem:[#allocation2 + $0xf0] sm:$0xff]
    %v101 = vld [vmem:[#allocation2 + $0xf8] sm:$0xff]
    %v102 = vld [vmem:[#allocation2 + $0x100] sm:$0xff]
    %v103 = vld [vmem:[#allocation2 + $0x108] sm:$0xff]
    %v104 = vld [vmem:[#allocation2 + $0x110] sm:$0xff]
    %v105 = vld [vmem:[#allocation2 + $0x118] sm:$0xff]
    %v106 = vld [vmem:[#allocation2 + $0x120] sm:$0xff]
    %v107 = vld [vmem:[#allocation2 + $0x128] sm:$0xff]
    %v108 = vld [vmem:[#allocation2 + $0x130] sm:$0xff]
    %v109 = vld [vmem:[#allocation2 + $0x138] sm:$0xff]
    %v110 = vld [vmem:[#allocation2 + $0x140] sm:$0xff]
    %v111 = vld [vmem:[#allocation2 + $0x148] sm:$0xff]
    %v112 = vld [vmem:[#allocation2 + $0x150] sm:$0xff]
    %v113 = vld [vmem:[#allocation2 + $0x158] sm:$0xff]
    %v114 = vld [vmem:[#allocation2 + $0x160] sm:$0xff]
    %v115 = vld [vmem:[#allocation2 + $0x168] sm:$0xff]
    %v116 = vld [vmem:[#allocation2 + $0x170] sm:$0xff]
    %v117 = vld [vmem:[#allocation2 + $0x178] sm:$0xff]
    %v118 = vld [vmem:[#allocation2 + $0x180] sm:$0xff]
    %v119 = vld [vmem:[#allocation2 + $0x188] sm:$0xff]
    %v120 = vld [vmem:[#allocation2 + $0x190] sm:$0xff]
    %v121 = vld [vmem:[#allocation2 + $0x198] sm:$0xff]
    %v122 = vld [vmem:[#allocation2 + $0x1a0] sm:$0xff]
    %v123 = vld [vmem:[#allocation2 + $0x1a8] sm:$0xff]
    %v124 = vld [vmem:[#allocation2 + $0x1b0] sm:$0xff]
    %v125 = vld [vmem:[#allocation2 + $0x1b8] sm:$0xff]
    %v126 = vld [vmem:[#allocation2 + $0x1c0] sm:$0xff]
    %v127 = vld [vmem:[#allocation2 + $0x1c8] sm:$0xff]
    %v128 = vld [vmem:[#allocation2 + $0x1d0] sm:$0xff]
    %v129 = vld [vmem:[#allocation2 + $0x1d8] sm:$0xff]
    %v130 = vld [vmem:[#allocation2 + $0x1e0] sm:$0xff]
    %v131 = vld [vmem:[#allocation2 + $0x1e8] sm:$0xff]
    %v132 = vld [vmem:[#allocation2 + $0x1f0] sm:$0xff]
    %v133 = vld [vmem:[#allocation2 + $0x1f8] sm:$0xff]
    %v134 = vld [vmem:[#allocation2 + $0x200] sm:$0xff]
    %v135 = vld [vmem:[#allocation2 + $0x208] sm:$0xff]
    %v136 = vld [vmem:[#allocation2 + $0x210] sm:$0xff]
    %v137 = vld [vmem:[#allocation2 + $0x218] sm:$0xff]
    %v138 = vld [vmem:[#allocation2 + $0x220] sm:$0xff]
    %v139 = vld [vmem:[#allocation2 + $0x228] sm:$0xff]
    %v140 = vld [vmem:[#allocation2 + $0x230] sm:$0xff]
    %v141 = vld [vmem:[#allocation2 + $0x238] sm:$0xff]
    %v142 = vld [vmem:[#allocation2 + $0x240] sm:$0xff]
    %v143 = vld [vmem:[#allocation2 + $0x248] sm:$0xff]
    %v144 = vld [vmem:[#allocation2 + $0x250] sm:$0xff]
    %v145 = vld [vmem:[#allocation2 + $0x258] sm:$0xff]
    %v146 = vld [vmem:[#allocation2 + $0x260] sm:$0xff]
    %v147 = vld [vmem:[#allocation2 + $0x268] sm:$0xff]
    %v148 = vld [vmem:[#allocation2 + $0x270] sm:$0xff]
    %v149 = vld [vmem:[#allocation2 + $0x278] sm:$0xff]
    %v150 = vld [vmem:[#allocation2 + $0x280] sm:$0xff]
    %v151 = vld [vmem:[#allocation2 + $0x288] sm:$0xff]
    %v152 = vld [vmem:[#allocation2 + $0x290] sm:$0xff]
    %v153 = vld [vmem:[#allocation2 + $0x298] sm:$0xff]
    %v154 = vld [vmem:[#allocation2 + $0x2a0] sm:$0xff]
    %v155 = vld [vmem:[#allocation2 + $0x2a8] sm:$0xff]
    %v156 = vld [vmem:[#allocation2 + $0x2b0] sm:$0xff]
    %v157 = vld [vmem:[#allocation2 + $0x2b8] sm:$0xff]
    %v158 = vld [vmem:[#allocation2 + $0x2c0] sm:$0xff]
    %v159 = vld [vmem:[#allocation2 + $0x2c8] sm:$0xff]
    %v160 = vld [vmem:[#allocation2 + $0x2d0] sm:$0xff]
    %v161 = vld [vmem:[#allocation2 + $0x2d8] sm:$0xff]
    %v162 = vld [vmem:[#allocation2 + $0x2e0] sm:$0xff]
    %v163 = vld [vmem:[#allocation2 + $0x2e8] sm:$0xff]
    %v164 = vld [vmem:[#allocation2 + $0x2f0] sm:$0xff]
    %v165 = vld [vmem:[#allocation2 + $0x2f8] sm:$0xff]
    %v166 = vld [vmem:[#allocation2 + $0x300] sm:$0xff]
    %v167 = vld [vmem:[#allocation2 + $0x308] sm:$0xff]
    %v168 = vld [vmem:[#allocation2 + $0x310] sm:$0xff]
    %v169 = vld [vmem:[#allocation2 + $0x318] sm:$0xff]
    %v170 = vld [vmem:[#allocation2 + $0x320] sm:$0xff]
    %v171 = vld [vmem:[#allocation2 + $0x328] sm:$0xff]
    %v172 = vld [vmem:[#allocation2 + $0x330] sm:$0xff]
    %v173 = vld [vmem:[#allocation2 + $0x338] sm:$0xff]
    %v174 = vld [vmem:[#allocation2 + $0x340] sm:$0xff]
    %v175 = vld [vmem:[#allocation2 + $0x348] sm:$0xff]
    %v176 = vld [vmem:[#allocation2 + $0x350] sm:$0xff]
    %v177 = vld [vmem:[#allocation2 + $0x358] sm:$0xff]
    %v178 = vld [vmem:[#allocation2 + $0x360] sm:$0xff]
    %v179 = vld [vmem:[#allocation2 + $0x368] sm:$0xff]
    %v180 = vld [vmem:[#allocation2 + $0x370] sm:$0xff]
    %v181 = vld [vmem:[#allocation2 + $0x378] sm:$0xff]
    %v182 = vld [vmem:[#allocation2 + $0x380] sm:$0xff]
    %v183 = vld [vmem:[#allocation2 + $0x388] sm:$0xff]
    %v184 = vld [vmem:[#allocation2 + $0x390] sm:$0xff]
    %v185 = vld [vmem:[#allocation2 + $0x398] sm:$0xff]
    %v186 = vld [vmem:[#allocation2 + $0x3a0] sm:$0xff]
    %v187 = vld [vmem:[#allocation2 + $0x3a8] sm:$0xff]
    %v188 = vld [vmem:[#allocation2 + $0x3b0] sm:$0xff]
    %v189 = vld [vmem:[#allocation2 + $0x3b8] sm:$0xff]
    %v190 = vld [vmem:[#allocation2 + $0x3c0] sm:$0xff]
    %v191 = vld [vmem:[#allocation2 + $0x3c8] sm:$0xff]
    %v192 = vld [vmem:[#allocation2 + $0x3d0] sm:$0xff]
    %v193 = vld [vmem:[#allocation2 + $0x3d8] sm:$0xff]
    %v194 = vld [vmem:[#allocation2 + $0x3e0] sm:$0xff]
    %v195 = vld [vmem:[#allocation2 + $0x3e8] sm:$0xff]
    %v196 = vld [vmem:[#allocation2 + $0x3f0] sm:$0xff]
    %v197 = vld [vmem:[#allocation2 + $0x3f8] sm:$0xff]
    %v198 = vld [vmem:[#allocation2 + $0x400] sm:$0xff]
    %v199 = vld [vmem:[#allocation2 + $0x408] sm:$0xff]
    %v200 = vld [vmem:[#allocation2 + $0x410] sm:$0xff]
    %v201 = vld [vmem:[#allocation2 + $0x418] sm:$0xff]
    %v202 = vld [vmem:[#allocation2 + $0x420] sm:$0xff]
    %v203 = vld [vmem:[#allocation2 + $0x428] sm:$0xff]
    %v204 = vld [vmem:[#allocation2 + $0x430] sm:$0xff]
    %v205 = vld [vmem:[#allocation2 + $0x438] sm:$0xff]
    %v206 = vld [vmem:[#allocation2 + $0x440] sm:$0xff]
    %v207 = vld [vmem:[#allocation2 + $0x448] sm:$0xff]
    %v208 = vld [vmem:[#allocation2 + $0x450] sm:$0xff]
    %v209 = vld [vmem:[#allocation2 + $0x458] sm:$0xff]
    %v210 = vld [vmem:[#allocation2 + $0x460] sm:$0xff]
    %v211 = vld [vmem:[#allocation2 + $0x468] sm:$0xff]
    %v212 = vld [vmem:[#allocation2 + $0x470] sm:$0xff]
    %v213 = vld [vmem:[#allocation2 + $0x478] sm:$0xff]
    %v214 = vld [vmem:[#allocation2 + $0x480] sm:$0xff]
    %v215 = vld [vmem:[#allocation2 + $0x488] sm:$0xff]
    %v216 = vld [vmem:[#allocation2 + $0x490] sm:$0xff]
    %v217 = vld [vmem:[#allocation2 + $0x498] sm:$0xff]
    %v218 = vld [vmem:[#allocation2 + $0x4a0] sm:$0xff]
    %v219 = vld [vmem:[#allocation2 + $0x4a8] sm:$0xff]
    %v220 = vld [vmem:[#allocation2 + $0x4b0] sm:$0xff]
    %v221 = vld [vmem:[#allocation2 + $0x4b8] sm:$0xff]
    %v222 = vld [vmem:[#allocation2 + $0x4c0] sm:$0xff]
    %v223 = vld [vmem:[#allocation2 + $0x4c8] sm:$0xff]
    %v224 = vld [vmem:[#allocation2 + $0x4d0] sm:$0xff]
    %v225 = vld [vmem:[#allocation2 + $0x4d8] sm:$0xff]
    %v226 = vld [vmem:[#allocation2 + $0x4e0] sm:$0xff]
    %v227 = vld [vmem:[#allocation2 + $0x4e8] sm:$0xff]
    %v228 = vld [vmem:[#allocation2 + $0x4f0] sm:$0xff]
    %v229 = vld [vmem:[#allocation2 + $0x4f8] sm:$0xff]
    %v230 = vld [vmem:[#allocation2 + $0x500] sm:$0xff]
    %v231 = vld [vmem:[#allocation2 + $0x508] sm:$0xff]
    %v232 = vld [vmem:[#allocation2 + $0x510] sm:$0xff]
    %v233 = vld [vmem:[#allocation2 + $0x518] sm:$0xff]
    %v234 = vld [vmem:[#allocation2 + $0x520] sm:$0xff]
    %v235 = vld [vmem:[#allocation2 + $0x528] sm:$0xff]
    %v236 = vld [vmem:[#allocation2 + $0x530] sm:$0xff]
    %v237 = vld [vmem:[#allocation2 + $0x538] sm:$0xff]
    %v238 = vld [vmem:[#allocation2 + $0x540] sm:$0xff]
    %v239 = vld [vmem:[#allocation2 + $0x548] sm:$0xff]
    %v240 = vld [vmem:[#allocation2 + $0x550] sm:$0xff]
    %v241 = vld [vmem:[#allocation2 + $0x558] sm:$0xff]
    %v242 = vld [vmem:[#allocation2 + $0x560] sm:$0xff]
    %v243 = vld [vmem:[#allocation2 + $0x568] sm:$0xff]
    %v244 = vld [vmem:[#allocation2 + $0x570] sm:$0xff]
    %v245 = vld [vmem:[#allocation2 + $0x578] sm:$0xff]
    %v246 = vld [vmem:[#allocation2 + $0x580] sm:$0xff]
    %v247 = vld [vmem:[#allocation2 + $0x588] sm:$0xff]
    %v248 = vld [vmem:[#allocation2 + $0x590] sm:$0xff]
    %v249 = vld [vmem:[#allocation2 + $0x598] sm:$0xff]
    %v250 = vld [vmem:[#allocation2 + $0x5a0] sm:$0xff]
    %v251 = vld [vmem:[#allocation2 + $0x5a8] sm:$0xff]
    %v252 = vld [vmem:[#allocation2 + $0x5b0] sm:$0xff]
    %v253 = vld [vmem:[#allocation2 + $0x5b8] sm:$0xff]
    %v254 = vld [vmem:[#allocation2 + $0x5c0] sm:$0xff]
    %v255 = vld [vmem:[#allocation2 + $0x5c8] sm:$0xff]
    %v256 = vld [vmem:[#allocation2 + $0x5d0] sm:$0xff]
    %v257 = vld [vmem:[#allocation2 + $0x5d8] sm:$0xff]
    %v258 = vld [vmem:[#allocation2 + $0x5e0] sm:$0xff]
    %v259 = vld [vmem:[#allocation2 + $0x5e8] sm:$0xff]
    %v260 = vld [vmem:[#allocation2 + $0x5f0] sm:$0xff]
    %v261 = vld [vmem:[#allocation2 + $0x5f8] sm:$0xff]
    %v262 = vld [vmem:[#allocation2 + $0x600] sm:$0xff]
    %v263 = vld [vmem:[#allocation2 + $0x608] sm:$0xff]
    %v264 = vld [vmem:[#allocation2 + $0x610] sm:$0xff]
    %v265 = vld [vmem:[#allocation2 + $0x618] sm:$0xff]
    %v266 = vld [vmem:[%s2] sm:$0xf]
    %v268 = vperm.slane %v266, 0
    %v269 = vperm.slane %v266, 1
    %v270 = vperm.slane %v266, 2
    %v271 = vperm.slane %v266, 3
    %v472 = vunpack.c.l.b16 %v70
    %v473 = vunpack.c.h.b16 %v70
    %v474 = vunpack.c.l.b16 %v71
    %v475 = vunpack.c.h.b16 %v71
    %v476 = vunpack.c.l.b16 %v72
    %v477 = vunpack.c.h.b16 %v72
    %v478 = vunpack.c.l.b16 %v73
    %v479 = vunpack.c.h.b16 %v73
    %v480 = vunpack.c.l.b16 %v74
    %v481 = vunpack.c.h.b16 %v74
    %v482 = vunpack.c.l.b16 %v75
    %v483 = vunpack.c.h.b16 %v75
    %v484 = vunpack.c.l.b16 %v76
    %v485 = vunpack.c.h.b16 %v76
    %v486 = vunpack.c.l.b16 %v77
    %v487 = vunpack.c.h.b16 %v77
    %v488 = vunpack.c.l.b16 %v78
    %v489 = vunpack.c.h.b16 %v78
    %v490 = vunpack.c.l.b16 %v79
    %v491 = vunpack.c.h.b16 %v79
    %v492 = vunpack.c.l.b16 %v80
    %v493 = vunpack.c.h.b16 %v80
    %v494 = vunpack.c.l.b16 %v81
    %v495 = vunpack.c.h.b16 %v81
    %v496 = vunpack.c.l.b16 %v82
    %v497 = vunpack.c.h.b16 %v82
    %v498 = vunpack.c.l.b16 %v83
    %v499 = vunpack.c.h.b16 %v83
    %v500 = vunpack.c.l.b16 %v84
    %v501 = vunpack.c.h.b16 %v84
    %v502 = vunpack.c.l.b16 %v85
    %v503 = vunpack.c.h.b16 %v85
    %v504 = vunpack.c.l.b16 %v86
    %v505 = vunpack.c.h.b16 %v86
    %v506 = vunpack.c.l.b16 %v87
    %v507 = vunpack.c.h.b16 %v87
    %v508 = vunpack.c.l.b16 %v88
    %v509 = vunpack.c.h.b16 %v88
    %v510 = vunpack.c.l.b16 %v89
    %v511 = vunpack.c.h.b16 %v89
    %v512 = vunpack.c.l.b16 %v90
    %v513 = vunpack.c.h.b16 %v90
    %v514 = vunpack.c.l.b16 %v91
    %v515 = vunpack.c.h.b16 %v91
    %v516 = vunpack.c.l.b16 %v92
    %v517 = vunpack.c.h.b16 %v92
    %v518 = vunpack.c.l.b16 %v93
    %v519 = vunpack.c.h.b16 %v93
    %v520 = vunpack.c.l.b16 %v94
    %v521 = vunpack.c.h.b16 %v94
    %v522 = vunpack.c.l.b16 %v95
    %v523 = vunpack.c.h.b16 %v95
    %v524 = vunpack.c.l.b16 %v96
    %v525 = vunpack.c.h.b16 %v96
    %v526 = vunpack.c.l.b16 %v97
    %v527 = vunpack.c.h.b16 %v97
    %v528 = vunpack.c.l.b16 %v98
    %v529 = vunpack.c.h.b16 %v98
    %v530 = vunpack.c.l.b16 %v99
    %v531 = vunpack.c.h.b16 %v99
    %v532 = vunpack.c.l.b16 %v100
    %v533 = vunpack.c.h.b16 %v100
    %v534 = vunpack.c.l.b16 %v101
    %v535 = vunpack.c.h.b16 %v101
    %v536 = vunpack.c.l.b16 %v102
    %v537 = vunpack.c.h.b16 %v102
    %v538 = vunpack.c.l.b16 %v103
    %v539 = vunpack.c.h.b16 %v103
    %v540 = vunpack.c.l.b16 %v104
    %v541 = vunpack.c.h.b16 %v104
    %v542 = vunpack.c.l.b16 %v105
    %v543 = vunpack.c.h.b16 %v105
    %v544 = vunpack.c.l.b16 %v106
    %v545 = vunpack.c.h.b16 %v106
    %v546 = vunpack.c.l.b16 %v107
    %v547 = vunpack.c.h.b16 %v107
    %v548 = vunpack.c.l.b16 %v108
    %v549 = vunpack.c.h.b16 %v108
    %v550 = vunpack.c.l.b16 %v109
    %v551 = vunpack.c.h.b16 %v109
    %v552 = vunpack.c.l.b16 %v110
    %v553 = vunpack.c.h.b16 %v110
    %v554 = vunpack.c.l.b16 %v111
    %v555 = vunpack.c.h.b16 %v111
    %v556 = vunpack.c.l.b16 %v112
    %v557 = vunpack.c.h.b16 %v112
    %v558 = vunpack.c.l.b16 %v113
    %v559 = vunpack.c.h.b16 %v113
    %v560 = vunpack.c.l.b16 %v114
    %v561 = vunpack.c.h.b16 %v114
    %v562 = vunpack.c.l.b16 %v115
    %v563 = vunpack.c.h.b16 %v115
    %v564 = vunpack.c.l.b16 %v116
    %v565 = vunpack.c.h.b16 %v116
    %v566 = vunpack.c.l.b16 %v117
    %v567 = vunpack.c.h.b16 %v117
    %v568 = vunpack.c.l.b16 %v118
    %v569 = vunpack.c.h.b16 %v118
    %v570 = vunpack.c.l.b16 %v119
    %v571 = vunpack.c.h.b16 %v119
    %v572 = vunpack.c.l.b16 %v120
    %v573 = vunpack.c.h.b16 %v120
    %v574 = vunpack.c.l.b16 %v121
    %v575 = vunpack.c.h.b16 %v121
    %v576 = vunpack.c.l.b16 %v122
    %v577 = vunpack.c.h.b16 %v122
    %v578 = vunpack.c.l.b16 %v123
    %v579 = vunpack.c.h.b16 %v123
    %v580 = vunpack.c.l.b16 %v124
    %v581 = vunpack.c.h.b16 %v124
    %v582 = vunpack.c.l.b16 %v125
    %v583 = vunpack.c.h.b16 %v125
    %v584 = vunpack.c.l.b16 %v126
    %v585 = vunpack.c.h.b16 %v126
    %v586 = vunpack.c.l.b16 %v127
    %v587 = vunpack.c.h.b16 %v127
    %v588 = vunpack.c.l.b16 %v128
    %v589 = vunpack.c.h.b16 %v128
    %v590 = vunpack.c.l.b16 %v129
    %v591 = vunpack.c.h.b16 %v129
    %v592 = vunpack.c.l.b16 %v130
    %v593 = vunpack.c.h.b16 %v130
    %v594 = vunpack.c.l.b16 %v131
    %v595 = vunpack.c.h.b16 %v131
    %v596 = vunpack.c.l.b16 %v132
    %v597 = vunpack.c.h.b16 %v132
    %v598 = vunpack.c.l.b16 %v133
    %v599 = vunpack.c.h.b16 %v133
    %v600 = vunpack.c.l.b16 %v134
    %v601 = vunpack.c.h.b16 %v134
    %v602 = vunpack.c.l.b16 %v135
    %v603 = vunpack.c.h.b16 %v135
    %v604 = vunpack.c.l.b16 %v136
    %v605 = vunpack.c.h.b16 %v136
    %v606 = vunpack.c.l.b16 %v137
    %v607 = vunpack.c.h.b16 %v137
    %v608 = vunpack.c.l.b16 %v138
    %v609 = vunpack.c.h.b16 %v138
    %v610 = vunpack.c.l.b16 %v139
    %v611 = vunpack.c.h.b16 %v139
    %v612 = vunpack.c.l.b16 %v140
    %v613 = vunpack.c.h.b16 %v140
    %v614 = vunpack.c.l.b16 %v141
    %v615 = vunpack.c.h.b16 %v141
    %v616 = vunpack.c.l.b16 %v142
    %v617 = vunpack.c.h.b16 %v142
    %v618 = vunpack.c.l.b16 %v143
    %v619 = vunpack.c.h.b16 %v143
    %v620 = vunpack.c.l.b16 %v144
    %v621 = vunpack.c.h.b16 %v144
    %v622 = vunpack.c.l.b16 %v145
    %v623 = vunpack.c.h.b16 %v145
    %v624 = vunpack.c.l.b16 %v146
    %v625 = vunpack.c.h.b16 %v146
    %v626 = vunpack.c.l.b16 %v147
    %v627 = vunpack.c.h.b16 %v147
    %v628 = vunpack.c.l.b16 %v148
    %v629 = vunpack.c.h.b16 %v148
    %v630 = vunpack.c.l.b16 %v149
    %v631 = vunpack.c.h.b16 %v149
    %v632 = vunpack.c.l.b16 %v150
    %v633 = vunpack.c.h.b16 %v150
    %v634 = vunpack.c.l.b16 %v151
    %v635 = vunpack.c.h.b16 %v151
    %v636 = vunpack.c.l.b16 %v152
    %v637 = vunpack.c.h.b16 %v152
    %v638 = vunpack.c.l.b16 %v153
    %v639 = vunpack.c.h.b16 %v153
    %v640 = vunpack.c.l.b16 %v154
    %v641 = vunpack.c.h.b16 %v154
    %v642 = vunpack.c.l.b16 %v155
    %v643 = vunpack.c.h.b16 %v155
    %v644 = vunpack.c.l.b16 %v156
    %v645 = vunpack.c.h.b16 %v156
    %v646 = vunpack.c.l.b16 %v157
    %v647 = vunpack.c.h.b16 %v157
    %v648 = vunpack.c.l.b16 %v158
    %v649 = vunpack.c.h.b16 %v158
    %v650 = vunpack.c.l.b16 %v159
    %v651 = vunpack.c.h.b16 %v159
    %v652 = vunpack.c.l.b16 %v160
    %v653 = vunpack.c.h.b16 %v160
    %v654 = vunpack.c.l.b16 %v161
    %v655 = vunpack.c.h.b16 %v161
    %v656 = vunpack.c.l.b16 %v162
    %v657 = vunpack.c.h.b16 %v162
    %v658 = vunpack.c.l.b16 %v163
    %v659 = vunpack.c.h.b16 %v163
    %v660 = vunpack.c.l.b16 %v164
    %v661 = vunpack.c.h.b16 %v164
    %v662 = vunpack.c.l.b16 %v165
    %v663 = vunpack.c.h.b16 %v165
    %v664 = vunpack.c.l.b16 %v166
    %v665 = vunpack.c.h.b16 %v166
    %v666 = vunpack.c.l.b16 %v167
    %v667 = vunpack.c.h.b16 %v167
    %v668 = vunpack.c.l.b16 %v168
    %v669 = vunpack.c.h.b16 %v168
    %v670 = vunpack.c.l.b16 %v169
    %v671 = vunpack.c.h.b16 %v169
    %v672 = vunpack.c.l.b16 %v170
    %v673 = vunpack.c.h.b16 %v170
    %v674 = vunpack.c.l.b16 %v171
    %v675 = vunpack.c.h.b16 %v171
    %v676 = vunpack.c.l.b16 %v172
    %v677 = vunpack.c.h.b16 %v172
    %v678 = vunpack.c.l.b16 %v173
    %v679 = vunpack.c.h.b16 %v173
    %v680 = vunpack.c.l.b16 %v174
    %v681 = vunpack.c.h.b16 %v174
    %v682 = vunpack.c.l.b16 %v175
    %v683 = vunpack.c.h.b16 %v175
    %v684 = vunpack.c.l.b16 %v176
    %v685 = vunpack.c.h.b16 %v176
    %v686 = vunpack.c.l.b16 %v177
    %v687 = vunpack.c.h.b16 %v177
    %v688 = vunpack.c.l.b16 %v178
    %v689 = vunpack.c.h.b16 %v178
    %v690 = vunpack.c.l.b16 %v179
    %v691 = vunpack.c.h.b16 %v179
    %v692 = vunpack.c.l.b16 %v180
    %v693 = vunpack.c.h.b16 %v180
    %v694 = vunpack.c.l.b16 %v181
    %v695 = vunpack.c.h.b16 %v181
    %v696 = vunpack.c.l.b16 %v182
    %v697 = vunpack.c.h.b16 %v182
    %v698 = vunpack.c.l.b16 %v183
    %v699 = vunpack.c.h.b16 %v183
    %v700 = vunpack.c.l.b16 %v184
    %v701 = vunpack.c.h.b16 %v184
    %v702 = vunpack.c.l.b16 %v185
    %v703 = vunpack.c.h.b16 %v185
    %v704 = vunpack.c.l.b16 %v186
    %v705 = vunpack.c.h.b16 %v186
    %v706 = vunpack.c.l.b16 %v187
    %v707 = vunpack.c.h.b16 %v187
    %v708 = vunpack.c.l.b16 %v188
    %v709 = vunpack.c.h.b16 %v188
    %v710 = vunpack.c.l.b16 %v189
    %v711 = vunpack.c.h.b16 %v189
    %v712 = vunpack.c.l.b16 %v190
    %v713 = vunpack.c.h.b16 %v190
    %v714 = vunpack.c.l.b16 %v191
    %v715 = vunpack.c.h.b16 %v191
    %v716 = vunpack.c.l.b16 %v192
    %v717 = vunpack.c.h.b16 %v192
    %v718 = vunpack.c.l.b16 %v193
    %v719 = vunpack.c.h.b16 %v193
    %v720 = vunpack.c.l.b16 %v194
    %v721 = vunpack.c.h.b16 %v194
    %v722 = vunpack.c.l.b16 %v195
    %v723 = vunpack.c.h.b16 %v195
    %v724 = vunpack.c.l.b16 %v196
    %v725 = vunpack.c.h.b16 %v196
    %v726 = vunpack.c.l.b16 %v197
    %v727 = vunpack.c.h.b16 %v197
    %v728 = vunpack.c.l.b16 %v198
    %v729 = vunpack.c.h.b16 %v198
    %v730 = vunpack.c.l.b16 %v199
    %v731 = vunpack.c.h.b16 %v199
    %v732 = vunpack.c.l.b16 %v200
    %v733 = vunpack.c.h.b16 %v200
    %v734 = vunpack.c.l.b16 %v201
    %v735 = vunpack.c.h.b16 %v201
    %v736 = vunpack.c.l.b16 %v202
    %v737 = vunpack.c.h.b16 %v202
    %v738 = vunpack.c.l.b16 %v203
    %v739 = vunpack.c.h.b16 %v203
    %v740 = vunpack.c.l.b16 %v204
    %v741 = vunpack.c.h.b16 %v204
    %v742 = vunpack.c.l.b16 %v205
    %v743 = vunpack.c.h.b16 %v205
    %v744 = vunpack.c.l.b16 %v206
    %v745 = vunpack.c.h.b16 %v206
    %v746 = vunpack.c.l.b16 %v207
    %v747 = vunpack.c.h.b16 %v207
    %v748 = vunpack.c.l.b16 %v208
    %v749 = vunpack.c.h.b16 %v208
    %v750 = vunpack.c.l.b16 %v209
    %v751 = vunpack.c.h.b16 %v209
    %v752 = vunpack.c.l.b16 %v210
    %v753 = vunpack.c.h.b16 %v210
    %v754 = vunpack.c.l.b16 %v211
    %v755 = vunpack.c.h.b16 %v211
    %v756 = vunpack.c.l.b16 %v212
    %v757 = vunpack.c.h.b16 %v212
    %v758 = vunpack.c.l.b16 %v213
    %v759 = vunpack.c.h.b16 %v213
    %v760 = vunpack.c.l.b16 %v214
    %v761 = vunpack.c.h.b16 %v214
    %v762 = vunpack.c.l.b16 %v215
    %v763 = vunpack.c.h.b16 %v215
    %v764 = vunpack.c.l.b16 %v216
    %v765 = vunpack.c.h.b16 %v216
    %v766 = vunpack.c.l.b16 %v217
    %v767 = vunpack.c.h.b16 %v217
    %v768 = vunpack.c.l.b16 %v218
    %v769 = vunpack.c.h.b16 %v218
    %v770 = vunpack.c.l.b16 %v219
    %v771 = vunpack.c.h.b16 %v219
    %v772 = vunpack.c.l.b16 %v220
    %v773 = vunpack.c.h.b16 %v220
    %v774 = vunpack.c.l.b16 %v221
    %v775 = vunpack.c.h.b16 %v221
    %v776 = vunpack.c.l.b16 %v222
    %v777 = vunpack.c.h.b16 %v222
    %v778 = vunpack.c.l.b16 %v223
    %v779 = vunpack.c.h.b16 %v223
    %v780 = vunpack.c.l.b16 %v224
    %v781 = vunpack.c.h.b16 %v224
    %v782 = vunpack.c.l.b16 %v225
    %v783 = vunpack.c.h.b16 %v225
    %v784 = vunpack.c.l.b16 %v226
    %v785 = vunpack.c.h.b16 %v226
    %v786 = vunpack.c.l.b16 %v227
    %v787 = vunpack.c.h.b16 %v227
    %v788 = vunpack.c.l.b16 %v228
    %v789 = vunpack.c.h.b16 %v228
    %v790 = vunpack.c.l.b16 %v229
    %v791 = vunpack.c.h.b16 %v229
    %v792 = vunpack.c.l.b16 %v230
    %v793 = vunpack.c.h.b16 %v230
    %v794 = vunpack.c.l.b16 %v231
    %v795 = vunpack.c.h.b16 %v231
    %v796 = vunpack.c.l.b16 %v232
    %v797 = vunpack.c.h.b16 %v232
    %v798 = vunpack.c.l.b16 %v233
    %v799 = vunpack.c.h.b16 %v233
    %v800 = vunpack.c.l.b16 %v234
    %v801 = vunpack.c.h.b16 %v234
    %v802 = vunpack.c.l.b16 %v235
    %v803 = vunpack.c.h.b16 %v235
    %v804 = vunpack.c.l.b16 %v236
    %v805 = vunpack.c.h.b16 %v236
    %v806 = vunpack.c.l.b16 %v237
    %v807 = vunpack.c.h.b16 %v237
    %v808 = vunpack.c.l.b16 %v238
    %v809 = vunpack.c.h.b16 %v238
    %v810 = vunpack.c.l.b16 %v239
    %v811 = vunpack.c.h.b16 %v239
    %v812 = vunpack.c.l.b16 %v240
    %v813 = vunpack.c.h.b16 %v240
    %v814 = vunpack.c.l.b16 %v241
    %v815 = vunpack.c.h.b16 %v241
    %v816 = vunpack.c.l.b16 %v242
    %v817 = vunpack.c.h.b16 %v242
    %v818 = vunpack.c.l.b16 %v243
    %v819 = vunpack.c.h.b16 %v243
    %v820 = vunpack.c.l.b16 %v244
    %v821 = vunpack.c.h.b16 %v244
    %v822 = vunpack.c.l.b16 %v245
    %v823 = vunpack.c.h.b16 %v245
    %v824 = vunpack.c.l.b16 %v246
    %v825 = vunpack.c.h.b16 %v246
    %v826 = vunpack.c.l.b16 %v247
    %v827 = vunpack.c.h.b16 %v247
    %v828 = vunpack.c.l.b16 %v248
    %v829 = vunpack.c.h.b16 %v248
    %v830 = vunpack.c.l.b16 %v249
    %v831 = vunpack.c.h.b16 %v249
    %v832 = vunpack.c.l.b16 %v250
    %v833 = vunpack.c.h.b16 %v250
    %v834 = vunpack.c.l.b16 %v251
    %v835 = vunpack.c.h.b16 %v251
    %v836 = vunpack.c.l.b16 %v252
    %v837 = vunpack.c.h.b16 %v252
    %v838 = vunpack.c.l.b16 %v253
    %v839 = vunpack.c.h.b16 %v253
    %v840 = vunpack.c.l.b16 %v254
    %v841 = vunpack.c.h.b16 %v254
    %v842 = vunpack.c.l.b16 %v255
    %v843 = vunpack.c.h.b16 %v255
    %v844 = vunpack.c.l.b16 %v256
    %v845 = vunpack.c.h.b16 %v256
    %v846 = vunpack.c.l.b16 %v257
    %v847 = vunpack.c.h.b16 %v257
    %v848 = vunpack.c.l.b16 %v258
    %v849 = vunpack.c.h.b16 %v258
    %v850 = vunpack.c.l.b16 %v259
    %v851 = vunpack.c.h.b16 %v259
    %v852 = vunpack.c.l.b16 %v260
    %v853 = vunpack.c.h.b16 %v260
    %v854 = vunpack.c.l.b16 %v261
    %v855 = vunpack.c.h.b16 %v261
    %v856 = vunpack.c.l.b16 %v262
    %v857 = vunpack.c.h.b16 %v262
    %v858 = vunpack.c.l.b16 %v263
    %v859 = vunpack.c.h.b16 %v263
    %v860 = vunpack.c.l.b16 %v264
    %v861 = vunpack.c.h.b16 %v264
    %v862 = vunpack.c.l.b16 %v265
    %v863 = vunpack.c.h.b16 %v265
    %v864 = vpack.c.b16 %v476, %v472
    %v865 = vpack.c.b16 %v477, %v473
    %v866 = vpack.c.b16 %v478, %v474
    %v867 = vpack.c.b16 %v479, %v475
    %v868 = vpack.c.b16 %v484, %v480
    %v869 = vpack.c.b16 %v485, %v481
    %v870 = vpack.c.b16 %v486, %v482
    %v871 = vpack.c.b16 %v487, %v483
    %v872 = vpack.c.b16 %v492, %v488
    %v873 = vpack.c.b16 %v493, %v489
    %v874 = vpack.c.b16 %v494, %v490
    %v875 = vpack.c.b16 %v495, %v491
    %v876 = vpack.c.b16 %v500, %v496
    %v877 = vpack.c.b16 %v501, %v497
    %v878 = vpack.c.b16 %v502, %v498
    %v879 = vpack.c.b16 %v503, %v499
    %v880 = vpack.c.b16 %v508, %v504
    %v881 = vpack.c.b16 %v509, %v505
    %v882 = vpack.c.b16 %v510, %v506
    %v883 = vpack.c.b16 %v511, %v507
    %v884 = vpack.c.b16 %v516, %v512
    %v885 = vpack.c.b16 %v517, %v513
    %v886 = vpack.c.b16 %v518, %v514
    %v887 = vpack.c.b16 %v519, %v515
    %v888 = vpack.c.b16 %v524, %v520
    %v889 = vpack.c.b16 %v525, %v521
    %v890 = vpack.c.b16 %v526, %v522
    %v891 = vpack.c.b16 %v527, %v523
    %v892 = vpack.c.b16 %v532, %v528
    %v893 = vpack.c.b16 %v533, %v529
    %v894 = vpack.c.b16 %v534, %v530
    %v895 = vpack.c.b16 %v535, %v531
    %v896 = vpack.c.b16 %v540, %v536
    %v897 = vpack.c.b16 %v541, %v537
    %v898 = vpack.c.b16 %v542, %v538
    %v899 = vpack.c.b16 %v543, %v539
    %v900 = vpack.c.b16 %v548, %v544
    %v901 = vpack.c.b16 %v549, %v545
    %v902 = vpack.c.b16 %v550, %v546
    %v903 = vpack.c.b16 %v551, %v547
    %v904 = vpack.c.b16 %v556, %v552
    %v905 = vpack.c.b16 %v557, %v553
    %v906 = vpack.c.b16 %v558, %v554
    %v907 = vpack.c.b16 %v559, %v555
    %v908 = vpack.c.b16 %v564, %v560
    %v909 = vpack.c.b16 %v565, %v561
    %v910 = vpack.c.b16 %v566, %v562
    %v911 = vpack.c.b16 %v567, %v563
    %v912 = vpack.c.b16 %v572, %v568
    %v913 = vpack.c.b16 %v573, %v569
    %v914 = vpack.c.b16 %v574, %v570
    %v915 = vpack.c.b16 %v575, %v571
    %v916 = vpack.c.b16 %v580, %v576
    %v917 = vpack.c.b16 %v581, %v577
    %v918 = vpack.c.b16 %v582, %v578
    %v919 = vpack.c.b16 %v583, %v579
    %v920 = vpack.c.b16 %v588, %v584
    %v921 = vpack.c.b16 %v589, %v585
    %v922 = vpack.c.b16 %v590, %v586
    %v923 = vpack.c.b16 %v591, %v587
    %v924 = vpack.c.b16 %v596, %v592
    %v925 = vpack.c.b16 %v597, %v593
    %v926 = vpack.c.b16 %v598, %v594
    %v927 = vpack.c.b16 %v599, %v595
    %v928 = vpack.c.b16 %v604, %v600
    %v929 = vpack.c.b16 %v605, %v601
    %v930 = vpack.c.b16 %v606, %v602
    %v931 = vpack.c.b16 %v607, %v603
    %v932 = vpack.c.b16 %v612, %v608
    %v933 = vpack.c.b16 %v613, %v609
    %v934 = vpack.c.b16 %v614, %v610
    %v935 = vpack.c.b16 %v615, %v611
    %v936 = vpack.c.b16 %v620, %v616
    %v937 = vpack.c.b16 %v621, %v617
    %v938 = vpack.c.b16 %v622, %v618
    %v939 = vpack.c.b16 %v623, %v619
    %v940 = vpack.c.b16 %v628, %v624
    %v941 = vpack.c.b16 %v629, %v625
    %v942 = vpack.c.b16 %v630, %v626
    %v943 = vpack.c.b16 %v631, %v627
    %v944 = vpack.c.b16 %v636, %v632
    %v945 = vpack.c.b16 %v637, %v633
    %v946 = vpack.c.b16 %v638, %v634
    %v947 = vpack.c.b16 %v639, %v635
    %v948 = vpack.c.b16 %v644, %v640
    %v949 = vpack.c.b16 %v645, %v641
    %v950 = vpack.c.b16 %v646, %v642
    %v951 = vpack.c.b16 %v647, %v643
    %v952 = vpack.c.b16 %v652, %v648
    %v953 = vpack.c.b16 %v653, %v649
    %v954 = vpack.c.b16 %v654, %v650
    %v955 = vpack.c.b16 %v655, %v651
    %v956 = vpack.c.b16 %v660, %v656
    %v957 = vpack.c.b16 %v661, %v657
    %v958 = vpack.c.b16 %v662, %v658
    %v959 = vpack.c.b16 %v663, %v659
    %v960 = vpack.c.b16 %v668, %v664
    %v961 = vpack.c.b16 %v669, %v665
    %v962 = vpack.c.b16 %v670, %v666
    %v963 = vpack.c.b16 %v671, %v667
    %v964 = vpack.c.b16 %v676, %v672
    %v965 = vpack.c.b16 %v677, %v673
    %v966 = vpack.c.b16 %v678, %v674
    %v967 = vpack.c.b16 %v679, %v675
    %v968 = vpack.c.b16 %v684, %v680
    %v969 = vpack.c.b16 %v685, %v681
    %v970 = vpack.c.b16 %v686, %v682
    %v971 = vpack.c.b16 %v687, %v683
    %v972 = vpack.c.b16 %v692, %v688
    %v973 = vpack.c.b16 %v693, %v689
    %v974 = vpack.c.b16 %v694, %v690
    %v975 = vpack.c.b16 %v695, %v691
    %v976 = vpack.c.b16 %v700, %v696
    %v977 = vpack.c.b16 %v701, %v697
    %v978 = vpack.c.b16 %v702, %v698
    %v979 = vpack.c.b16 %v703, %v699
    %v980 = vpack.c.b16 %v708, %v704
    %v981 = vpack.c.b16 %v709, %v705
    %v982 = vpack.c.b16 %v710, %v706
    %v983 = vpack.c.b16 %v711, %v707
    %v984 = vpack.c.b16 %v716, %v712
    %v985 = vpack.c.b16 %v717, %v713
    %v986 = vpack.c.b16 %v718, %v714
    %v987 = vpack.c.b16 %v719, %v715
    %v988 = vpack.c.b16 %v724, %v720
    %v989 = vpack.c.b16 %v725, %v721
    %v990 = vpack.c.b16 %v726, %v722
    %v991 = vpack.c.b16 %v727, %v723
    %v992 = vpack.c.b16 %v732, %v728
    %v993 = vpack.c.b16 %v733, %v729
    %v994 = vpack.c.b16 %v734, %v730
    %v995 = vpack.c.b16 %v735, %v731
    %v996 = vpack.c.b16 %v740, %v736
    %v997 = vpack.c.b16 %v741, %v737
    %v998 = vpack.c.b16 %v742, %v738
    %v999 = vpack.c.b16 %v743, %v739
    %v1000 = vpack.c.b16 %v748, %v744
    %v1001 = vpack.c.b16 %v749, %v745
    %v1002 = vpack.c.b16 %v750, %v746
    %v1003 = vpack.c.b16 %v751, %v747
    %v1004 = vpack.c.b16 %v756, %v752
    %v1005 = vpack.c.b16 %v757, %v753
    %v1006 = vpack.c.b16 %v758, %v754
    %v1007 = vpack.c.b16 %v759, %v755
    %v1008 = vpack.c.b16 %v764, %v760
    %v1009 = vpack.c.b16 %v765, %v761
    %v1010 = vpack.c.b16 %v766, %v762
    %v1011 = vpack.c.b16 %v767, %v763
    %v1012 = vpack.c.b16 %v772, %v768
    %v1013 = vpack.c.b16 %v773, %v769
    %v1014 = vpack.c.b16 %v774, %v770
    %v1015 = vpack.c.b16 %v775, %v771
    %v1016 = vpack.c.b16 %v780, %v776
    %v1017 = vpack.c.b16 %v781, %v777
    %v1018 = vpack.c.b16 %v782, %v778
    %v1019 = vpack.c.b16 %v783, %v779
    %v1020 = vpack.c.b16 %v788, %v784
    %v1021 = vpack.c.b16 %v789, %v785
    %v1022 = vpack.c.b16 %v790, %v786
    %v1023 = vpack.c.b16 %v791, %v787
    %v1024 = vpack.c.b16 %v796, %v792
    %v1025 = vpack.c.b16 %v797, %v793
    %v1026 = vpack.c.b16 %v798, %v794
    %v1027 = vpack.c.b16 %v799, %v795
    %v1028 = vpack.c.b16 %v804, %v800
    %v1029 = vpack.c.b16 %v805, %v801
    %v1030 = vpack.c.b16 %v806, %v802
    %v1031 = vpack.c.b16 %v807, %v803
    %v1032 = vpack.c.b16 %v812, %v808
    %v1033 = vpack.c.b16 %v813, %v809
    %v1034 = vpack.c.b16 %v814, %v810
    %v1035 = vpack.c.b16 %v815, %v811
    %v1036 = vpack.c.b16 %v820, %v816
    %v1037 = vpack.c.b16 %v821, %v817
    %v1038 = vpack.c.b16 %v822, %v818
    %v1039 = vpack.c.b16 %v823, %v819
    %v1040 = vpack.c.b16 %v828, %v824
    %v1041 = vpack.c.b16 %v829, %v825
    %v1042 = vpack.c.b16 %v830, %v826
    %v1043 = vpack.c.b16 %v831, %v827
    %v1044 = vpack.c.b16 %v836, %v832
    %v1045 = vpack.c.b16 %v837, %v833
    %v1046 = vpack.c.b16 %v838, %v834
    %v1047 = vpack.c.b16 %v839, %v835
    %v1048 = vpack.c.b16 %v844, %v840
    %v1049 = vpack.c.b16 %v845, %v841
    %v1050 = vpack.c.b16 %v846, %v842
    %v1051 = vpack.c.b16 %v847, %v843
    %v1052 = vpack.c.b16 %v852, %v848
    %v1053 = vpack.c.b16 %v853, %v849
    %v1054 = vpack.c.b16 %v854, %v850
    %v1055 = vpack.c.b16 %v855, %v851
    %v1056 = vpack.c.b16 %v860, %v856
    %v1057 = vpack.c.b16 %v861, %v857
    %v1058 = vpack.c.b16 %v862, %v858
    %v1059 = vpack.c.b16 %v863, %v859
    %vm1256 = vcmask 130048
    %v1258 = vsel %vm1256, %v69, 0
    %1260 = vmatpush.bf16.msra.mxu0 %v892
    %1261 = vmatpush.bf16.msra.mxu0 %v888
    %1262 = vmatpush.bf16.msra.mxu0 %v884
    %1263 = vmatpush.bf16.msra.mxu0 %v880
    %1264 = vmatpush.bf16.msra.mxu0 %v876
    %1265 = vmatpush.bf16.msra.mxu0 %v872
    %1266 = vmatpush.bf16.msra.mxu0 %v868
    %1267 = vmatpush.bf16.msra.mxu0 %v864
    %1268 = vmatmul.bf16.gmra.mxu0 %v63
    %v1269 = vpop.f32.mrf.mxu0
    %v1270 = vadd.f32 %v268, %v1269
    %v1271 = vpop.f32.mrf.mxu0
    %v1272 = vadd.f32 %v268, %v1271
    %1273 = vdwg.mxu0
    %1274 = vmatpush.bf16.msra.mxu0 %v924
    %1275 = vmatpush.bf16.msra.mxu0 %v920
    %1276 = vmatpush.bf16.msra.mxu0 %v916
    %1277 = vmatpush.bf16.msra.mxu0 %v912
    %1278 = vmatpush.bf16.msra.mxu0 %v908
    %1279 = vmatpush.bf16.msra.mxu0 %v904
    %1280 = vmatpush.bf16.msra.mxu0 %v900
    %1281 = vmatpush.bf16.msra.mxu0 %v896
    %1282 = vmatmul.bf16.gmra.mxu0 %v64
    %v1283 = vpop.f32.mrf.mxu0
    %v1284 = vadd.f32 %v1270, %v1283
    %v1285 = vpop.f32.mrf.mxu0
    %v1286 = vadd.f32 %v1272, %v1285
    %1287 = vdwg.mxu0
    %1288 = vmatpush.bf16.msra.mxu0 %v956
    %1289 = vmatpush.bf16.msra.mxu0 %v952
    %1290 = vmatpush.bf16.msra.mxu0 %v948
    %1291 = vmatpush.bf16.msra.mxu0 %v944
    %1292 = vmatpush.bf16.msra.mxu0 %v940
    %1293 = vmatpush.bf16.msra.mxu0 %v936
    %1294 = vmatpush.bf16.msra.mxu0 %v932
    %1295 = vmatpush.bf16.msra.mxu0 %v928
    %1296 = vmatmul.bf16.gmra.mxu0 %v65
    %v1297 = vpop.f32.mrf.mxu0
    %v1298 = vadd.f32 %v1284, %v1297
    %v1299 = vpop.f32.mrf.mxu0
    %v1300 = vadd.f32 %v1286, %v1299
    %1301 = vdwg.mxu0
    %1302 = vmatpush.bf16.msra.mxu0 %v988
    %1303 = vmatpush.bf16.msra.mxu0 %v984
    %1304 = vmatpush.bf16.msra.mxu0 %v980
    %1305 = vmatpush.bf16.msra.mxu0 %v976
    %1306 = vmatpush.bf16.msra.mxu0 %v972
    %1307 = vmatpush.bf16.msra.mxu0 %v968
    %1308 = vmatpush.bf16.msra.mxu0 %v964
    %1309 = vmatpush.bf16.msra.mxu0 %v960
    %1310 = vmatmul.bf16.gmra.mxu0 %v66
    %v1311 = vpop.f32.mrf.mxu0
    %v1312 = vadd.f32 %v1298, %v1311
    %v1313 = vpop.f32.mrf.mxu0
    %v1314 = vadd.f32 %v1300, %v1313
    %1315 = vdwg.mxu0
    %1316 = vmatpush.bf16.msra.mxu0 %v1020
    %1317 = vmatpush.bf16.msra.mxu0 %v1016
    %1318 = vmatpush.bf16.msra.mxu0 %v1012
    %1319 = vmatpush.bf16.msra.mxu0 %v1008
    %1320 = vmatpush.bf16.msra.mxu0 %v1004
    %1321 = vmatpush.bf16.msra.mxu0 %v1000
    %1322 = vmatpush.bf16.msra.mxu0 %v996
    %1323 = vmatpush.bf16.msra.mxu0 %v992
    %1324 = vmatmul.bf16.gmra.mxu0 %v67
    %v1325 = vpop.f32.mrf.mxu0
    %v1326 = vadd.f32 %v1312, %v1325
    %v1327 = vpop.f32.mrf.mxu0
    %v1328 = vadd.f32 %v1314, %v1327
    %1329 = vdwg.mxu0
    %1330 = vmatpush.bf16.msra.mxu0 %v1052
    %1331 = vmatpush.bf16.msra.mxu0 %v1048
    %1332 = vmatpush.bf16.msra.mxu0 %v1044
    %1333 = vmatpush.bf16.msra.mxu0 %v1040
    %1334 = vmatpush.bf16.msra.mxu0 %v1036
    %1335 = vmatpush.bf16.msra.mxu0 %v1032
    %1336 = vmatpush.bf16.msra.mxu0 %v1028
    %1337 = vmatpush.bf16.msra.mxu0 %v1024
    %1338 = vmatmul.bf16.gmra.mxu0 %v68
    %v1339 = vpop.f32.mrf.mxu0
    %v1340 = vadd.f32 %v1326, %v1339
    %v1341 = vpop.f32.mrf.mxu0
    %v1342 = vadd.f32 %v1328, %v1341
    %1343 = vdwg.mxu0
    %1344 = vmatpush.bf16.msra.mxu0 0
    %1345 = vmatpush.bf16.msra.mxu0 0
    %1346 = vmatpush.bf16.msra.mxu0 0
    %1347 = vmatpush.bf16.msra.mxu0 0
    %1348 = vmatpush.bf16.msra.mxu0 0
    %1349 = vmatpush.bf16.msra.mxu0 0
    %1350 = vmatpush.bf16.msra.mxu0 0
    %1351 = vmatpush.bf16.msra.mxu0 %v1056
    %1352 = vmatmul.bf16.gmra.mxu0 %v1258
    %v1353 = vpop.f32.mrf.mxu0
    %v1354 = vadd.f32 %v1340, %v1353
    %v1355 = vpop.f32.mrf.mxu0
    %v1356 = vadd.f32 %v1342, %v1355
    %1357 = vdwg.mxu0
    %1358 = vmatpush.bf16.msra.mxu0 %v893
    %1359 = vmatpush.bf16.msra.mxu0 %v889
    %1360 = vmatpush.bf16.msra.mxu0 %v885
    %1361 = vmatpush.bf16.msra.mxu0 %v881
    %1362 = vmatpush.bf16.msra.mxu0 %v877
    %1363 = vmatpush.bf16.msra.mxu0 %v873
    %1364 = vmatpush.bf16.msra.mxu0 %v869
    %1365 = vmatpush.bf16.msra.mxu0 %v865
    %1366 = vmatmul.bf16.gmra.mxu0 %v63
    %v1367 = vpop.f32.mrf.mxu0
    %v1368 = vadd.f32 %v269, %v1367
    %v1369 = vpop.f32.mrf.mxu0
    %v1370 = vadd.f32 %v269, %v1369
    %1371 = vdwg.mxu0
    %1372 = vmatpush.bf16.msra.mxu0 %v925
    %1373 = vmatpush.bf16.msra.mxu0 %v921
    %1374 = vmatpush.bf16.msra.mxu0 %v917
    %1375 = vmatpush.bf16.msra.mxu0 %v913
    %1376 = vmatpush.bf16.msra.mxu0 %v909
    %1377 = vmatpush.bf16.msra.mxu0 %v905
    %1378 = vmatpush.bf16.msra.mxu0 %v901
    %1379 = vmatpush.bf16.msra.mxu0 %v897
    %1380 = vmatmul.bf16.gmra.mxu0 %v64
    %v1381 = vpop.f32.mrf.mxu0
    %v1382 = vadd.f32 %v1368, %v1381
    %v1383 = vpop.f32.mrf.mxu0
    %v1384 = vadd.f32 %v1370, %v1383
    %1385 = vdwg.mxu0
    %1386 = vmatpush.bf16.msra.mxu0 %v957
    %1387 = vmatpush.bf16.msra.mxu0 %v953
    %1388 = vmatpush.bf16.msra.mxu0 %v949
    %1389 = vmatpush.bf16.msra.mxu0 %v945
    %1390 = vmatpush.bf16.msra.mxu0 %v941
    %1391 = vmatpush.bf16.msra.mxu0 %v937
    %1392 = vmatpush.bf16.msra.mxu0 %v933
    %1393 = vmatpush.bf16.msra.mxu0 %v929
    %1394 = vmatmul.bf16.gmra.mxu0 %v65
    %v1395 = vpop.f32.mrf.mxu0
    %v1396 = vadd.f32 %v1382, %v1395
    %v1397 = vpop.f32.mrf.mxu0
    %v1398 = vadd.f32 %v1384, %v1397
    %1399 = vdwg.mxu0
    %1400 = vmatpush.bf16.msra.mxu0 %v989
    %1401 = vmatpush.bf16.msra.mxu0 %v985
    %1402 = vmatpush.bf16.msra.mxu0 %v981
    %1403 = vmatpush.bf16.msra.mxu0 %v977
    %1404 = vmatpush.bf16.msra.mxu0 %v973
    %1405 = vmatpush.bf16.msra.mxu0 %v969
    %1406 = vmatpush.bf16.msra.mxu0 %v965
    %1407 = vmatpush.bf16.msra.mxu0 %v961
    %1408 = vmatmul.bf16.gmra.mxu0 %v66
    %v1409 = vpop.f32.mrf.mxu0
    %v1410 = vadd.f32 %v1396, %v1409
    %v1411 = vpop.f32.mrf.mxu0
    %v1412 = vadd.f32 %v1398, %v1411
    %1413 = vdwg.mxu0
    %1414 = vmatpush.bf16.msra.mxu0 %v1021
    %1415 = vmatpush.bf16.msra.mxu0 %v1017
    %1416 = vmatpush.bf16.msra.mxu0 %v1013
    %1417 = vmatpush.bf16.msra.mxu0 %v1009
    %1418 = vmatpush.bf16.msra.mxu0 %v1005
    %1419 = vmatpush.bf16.msra.mxu0 %v1001
    %1420 = vmatpush.bf16.msra.mxu0 %v997
    %1421 = vmatpush.bf16.msra.mxu0 %v993
    %1422 = vmatmul.bf16.gmra.mxu0 %v67
    %v1423 = vpop.f32.mrf.mxu0
    %v1424 = vadd.f32 %v1410, %v1423
    %v1425 = vpop.f32.mrf.mxu0
    %v1426 = vadd.f32 %v1412, %v1425
    %1427 = vdwg.mxu0
    %1428 = vmatpush.bf16.msra.mxu0 %v1053
    %1429 = vmatpush.bf16.msra.mxu0 %v1049
    %1430 = vmatpush.bf16.msra.mxu0 %v1045
    %1431 = vmatpush.bf16.msra.mxu0 %v1041
    %1432 = vmatpush.bf16.msra.mxu0 %v1037
    %1433 = vmatpush.bf16.msra.mxu0 %v1033
    %1434 = vmatpush.bf16.msra.mxu0 %v1029
    %1435 = vmatpush.bf16.msra.mxu0 %v1025
    %1436 = vmatmul.bf16.gmra.mxu0 %v68
    %v1437 = vpop.f32.mrf.mxu0
    %v1438 = vadd.f32 %v1424, %v1437
    %v1439 = vpop.f32.mrf.mxu0
    %v1440 = vadd.f32 %v1426, %v1439
    %1441 = vdwg.mxu0
    %1442 = vmatpush.bf16.msra.mxu0 0
    %1443 = vmatpush.bf16.msra.mxu0 0
    %1444 = vmatpush.bf16.msra.mxu0 0
    %1445 = vmatpush.bf16.msra.mxu0 0
    %1446 = vmatpush.bf16.msra.mxu0 0
    %1447 = vmatpush.bf16.msra.mxu0 0
    %1448 = vmatpush.bf16.msra.mxu0 0
    %1449 = vmatpush.bf16.msra.mxu0 %v1057
    %1450 = vmatmul.bf16.gmra.mxu0 %v1258
    %v1451 = vpop.f32.mrf.mxu0
    %v1452 = vadd.f32 %v1438, %v1451
    %v1453 = vpop.f32.mrf.mxu0
    %v1454 = vadd.f32 %v1440, %v1453
    %1455 = vdwg.mxu0
    %1456 = vmatpush.bf16.msra.mxu0 %v894
    %1457 = vmatpush.bf16.msra.mxu0 %v890
    %1458 = vmatpush.bf16.msra.mxu0 %v886
    %1459 = vmatpush.bf16.msra.mxu0 %v882
    %1460 = vmatpush.bf16.msra.mxu0 %v878
    %1461 = vmatpush.bf16.msra.mxu0 %v874
    %1462 = vmatpush.bf16.msra.mxu0 %v870
    %1463 = vmatpush.bf16.msra.mxu0 %v866
    %1464 = vmatmul.bf16.gmra.mxu0 %v63
    %v1465 = vpop.f32.mrf.mxu0
    %v1466 = vadd.f32 %v270, %v1465
    %v1467 = vpop.f32.mrf.mxu0
    %v1468 = vadd.f32 %v270, %v1467
    %1469 = vdwg.mxu0
    %1470 = vmatpush.bf16.msra.mxu0 %v926
    %1471 = vmatpush.bf16.msra.mxu0 %v922
    %1472 = vmatpush.bf16.msra.mxu0 %v918
    %1473 = vmatpush.bf16.msra.mxu0 %v914
    %1474 = vmatpush.bf16.msra.mxu0 %v910
    %1475 = vmatpush.bf16.msra.mxu0 %v906
    %1476 = vmatpush.bf16.msra.mxu0 %v902
    %1477 = vmatpush.bf16.msra.mxu0 %v898
    %1478 = vmatmul.bf16.gmra.mxu0 %v64
    %v1479 = vpop.f32.mrf.mxu0
    %v1480 = vadd.f32 %v1466, %v1479
    %v1481 = vpop.f32.mrf.mxu0
    %v1482 = vadd.f32 %v1468, %v1481
    %1483 = vdwg.mxu0
    %1484 = vmatpush.bf16.msra.mxu0 %v958
    %1485 = vmatpush.bf16.msra.mxu0 %v954
    %1486 = vmatpush.bf16.msra.mxu0 %v950
    %1487 = vmatpush.bf16.msra.mxu0 %v946
    %1488 = vmatpush.bf16.msra.mxu0 %v942
    %1489 = vmatpush.bf16.msra.mxu0 %v938
    %1490 = vmatpush.bf16.msra.mxu0 %v934
    %1491 = vmatpush.bf16.msra.mxu0 %v930
    %1492 = vmatmul.bf16.gmra.mxu0 %v65
    %v1493 = vpop.f32.mrf.mxu0
    %v1494 = vadd.f32 %v1480, %v1493
    %v1495 = vpop.f32.mrf.mxu0
    %v1496 = vadd.f32 %v1482, %v1495
    %1497 = vdwg.mxu0
    %1498 = vmatpush.bf16.msra.mxu0 %v990
    %1499 = vmatpush.bf16.msra.mxu0 %v986
    %1500 = vmatpush.bf16.msra.mxu0 %v982
    %1501 = vmatpush.bf16.msra.mxu0 %v978
    %1502 = vmatpush.bf16.msra.mxu0 %v974
    %1503 = vmatpush.bf16.msra.mxu0 %v970
    %1504 = vmatpush.bf16.msra.mxu0 %v966
    %1505 = vmatpush.bf16.msra.mxu0 %v962
    %1506 = vmatmul.bf16.gmra.mxu0 %v66
    %v1507 = vpop.f32.mrf.mxu0
    %v1508 = vadd.f32 %v1494, %v1507
    %v1509 = vpop.f32.mrf.mxu0
    %v1510 = vadd.f32 %v1496, %v1509
    %1511 = vdwg.mxu0
    %1512 = vmatpush.bf16.msra.mxu0 %v1022
    %1513 = vmatpush.bf16.msra.mxu0 %v1018
    %1514 = vmatpush.bf16.msra.mxu0 %v1014
    %1515 = vmatpush.bf16.msra.mxu0 %v1010
    %1516 = vmatpush.bf16.msra.mxu0 %v1006
    %1517 = vmatpush.bf16.msra.mxu0 %v1002
    %1518 = vmatpush.bf16.msra.mxu0 %v998
    %1519 = vmatpush.bf16.msra.mxu0 %v994
    %1520 = vmatmul.bf16.gmra.mxu0 %v67
    %v1521 = vpop.f32.mrf.mxu0
    %v1522 = vadd.f32 %v1508, %v1521
    %v1523 = vpop.f32.mrf.mxu0
    %v1524 = vadd.f32 %v1510, %v1523
    %1525 = vdwg.mxu0
    %1526 = vmatpush.bf16.msra.mxu0 %v1054
    %1527 = vmatpush.bf16.msra.mxu0 %v1050
    %1528 = vmatpush.bf16.msra.mxu0 %v1046
    %1529 = vmatpush.bf16.msra.mxu0 %v1042
    %1530 = vmatpush.bf16.msra.mxu0 %v1038
    %1531 = vmatpush.bf16.msra.mxu0 %v1034
    %1532 = vmatpush.bf16.msra.mxu0 %v1030
    %1533 = vmatpush.bf16.msra.mxu0 %v1026
    %1534 = vmatmul.bf16.gmra.mxu0 %v68
    %v1535 = vpop.f32.mrf.mxu0
    %v1536 = vadd.f32 %v1522, %v1535
    %v1537 = vpop.f32.mrf.mxu0
    %v1538 = vadd.f32 %v1524, %v1537
    %1539 = vdwg.mxu0
    %1540 = vmatpush.bf16.msra.mxu0 0
    %1541 = vmatpush.bf16.msra.mxu0 0
    %1542 = vmatpush.bf16.msra.mxu0 0
    %1543 = vmatpush.bf16.msra.mxu0 0
    %1544 = vmatpush.bf16.msra.mxu0 0
    %1545 = vmatpush.bf16.msra.mxu0 0
    %1546 = vmatpush.bf16.msra.mxu0 0
    %1547 = vmatpush.bf16.msra.mxu0 %v1058
    %1548 = vmatmul.bf16.gmra.mxu0 %v1258
    %v1549 = vpop.f32.mrf.mxu0
    %v1550 = vadd.f32 %v1536, %v1549
    %v1551 = vpop.f32.mrf.mxu0
    %v1552 = vadd.f32 %v1538, %v1551
    %1553 = vdwg.mxu0
    %1554 = vmatpush.bf16.msra.mxu0 %v895
    %1555 = vmatpush.bf16.msra.mxu0 %v891
    %1556 = vmatpush.bf16.msra.mxu0 %v887
    %1557 = vmatpush.bf16.msra.mxu0 %v883
    %1558 = vmatpush.bf16.msra.mxu0 %v879
    %1559 = vmatpush.bf16.msra.mxu0 %v875
    %1560 = vmatpush.bf16.msra.mxu0 %v871
    %1561 = vmatpush.bf16.msra.mxu0 %v867
    %1562 = vmatmul.bf16.gmra.mxu0 %v63
    %v1563 = vpop.f32.mrf.mxu0
    %v1564 = vadd.f32 %v271, %v1563
    %v1565 = vpop.f32.mrf.mxu0
    %v1566 = vadd.f32 %v271, %v1565
    %1567 = vdwg.mxu0
    %1568 = vmatpush.bf16.msra.mxu0 %v927
    %1569 = vmatpush.bf16.msra.mxu0 %v923
    %1570 = vmatpush.bf16.msra.mxu0 %v919
    %1571 = vmatpush.bf16.msra.mxu0 %v915
    %1572 = vmatpush.bf16.msra.mxu0 %v911
    %1573 = vmatpush.bf16.msra.mxu0 %v907
    %1574 = vmatpush.bf16.msra.mxu0 %v903
    %1575 = vmatpush.bf16.msra.mxu0 %v899
    %1576 = vmatmul.bf16.gmra.mxu0 %v64
    %v1577 = vpop.f32.mrf.mxu0
    %v1578 = vadd.f32 %v1564, %v1577
    %v1579 = vpop.f32.mrf.mxu0
    %v1580 = vadd.f32 %v1566, %v1579
    %1581 = vdwg.mxu0
    %1582 = vmatpush.bf16.msra.mxu0 %v959
    %1583 = vmatpush.bf16.msra.mxu0 %v955
    %1584 = vmatpush.bf16.msra.mxu0 %v951
    %1585 = vmatpush.bf16.msra.mxu0 %v947
    %1586 = vmatpush.bf16.msra.mxu0 %v943
    %1587 = vmatpush.bf16.msra.mxu0 %v939
    %1588 = vmatpush.bf16.msra.mxu0 %v935
    %1589 = vmatpush.bf16.msra.mxu0 %v931
    %1590 = vmatmul.bf16.gmra.mxu0 %v65
    %v1591 = vpop.f32.mrf.mxu0
    %v1592 = vadd.f32 %v1578, %v1591
    %v1593 = vpop.f32.mrf.mxu0
    %v1594 = vadd.f32 %v1580, %v1593
    %1595 = vdwg.mxu0
    %1596 = vmatpush.bf16.msra.mxu0 %v991
    %1597 = vmatpush.bf16.msra.mxu0 %v987
    %1598 = vmatpush.bf16.msra.mxu0 %v983
    %1599 = vmatpush.bf16.msra.mxu0 %v979
    %1600 = vmatpush.bf16.msra.mxu0 %v975
    %1601 = vmatpush.bf16.msra.mxu0 %v971
    %1602 = vmatpush.bf16.msra.mxu0 %v967
    %1603 = vmatpush.bf16.msra.mxu0 %v963
    %1604 = vmatmul.bf16.gmra.mxu0 %v66
    %v1605 = vpop.f32.mrf.mxu0
    %v1606 = vadd.f32 %v1592, %v1605
    %v1607 = vpop.f32.mrf.mxu0
    %v1608 = vadd.f32 %v1594, %v1607
    %1609 = vdwg.mxu0
    %1610 = vmatpush.bf16.msra.mxu0 %v1023
    %1611 = vmatpush.bf16.msra.mxu0 %v1019
    %1612 = vmatpush.bf16.msra.mxu0 %v1015
    %1613 = vmatpush.bf16.msra.mxu0 %v1011
    %1614 = vmatpush.bf16.msra.mxu0 %v1007
    %1615 = vmatpush.bf16.msra.mxu0 %v1003
    %1616 = vmatpush.bf16.msra.mxu0 %v999
    %1617 = vmatpush.bf16.msra.mxu0 %v995
    %1618 = vmatmul.bf16.gmra.mxu0 %v67
    %v1619 = vpop.f32.mrf.mxu0
    %v1620 = vadd.f32 %v1606, %v1619
    %v1621 = vpop.f32.mrf.mxu0
    %v1622 = vadd.f32 %v1608, %v1621
    %1623 = vdwg.mxu0
    %1624 = vmatpush.bf16.msra.mxu0 %v1055
    %1625 = vmatpush.bf16.msra.mxu0 %v1051
    %1626 = vmatpush.bf16.msra.mxu0 %v1047
    %1627 = vmatpush.bf16.msra.mxu0 %v1043
    %1628 = vmatpush.bf16.msra.mxu0 %v1039
    %1629 = vmatpush.bf16.msra.mxu0 %v1035
    %1630 = vmatpush.bf16.msra.mxu0 %v1031
    %1631 = vmatpush.bf16.msra.mxu0 %v1027
    %1632 = vmatmul.bf16.gmra.mxu0 %v68
    %v1633 = vpop.f32.mrf.mxu0
    %v1634 = vadd.f32 %v1620, %v1633
    %v1635 = vpop.f32.mrf.mxu0
    %v1636 = vadd.f32 %v1622, %v1635
    %1637 = vdwg.mxu0
    %1638 = vmatpush.bf16.msra.mxu0 0
    %1639 = vmatpush.bf16.msra.mxu0 0
    %1640 = vmatpush.bf16.msra.mxu0 0
    %1641 = vmatpush.bf16.msra.mxu0 0
    %1642 = vmatpush.bf16.msra.mxu0 0
    %1643 = vmatpush.bf16.msra.mxu0 0
    %1644 = vmatpush.bf16.msra.mxu0 0
    %1645 = vmatpush.bf16.msra.mxu0 %v1059
    %1646 = vmatmul.bf16.gmra.mxu0 %v1258
    %v1647 = vpop.f32.mrf.mxu0
    %v1648 = vadd.f32 %v1634, %v1647
    %v1649 = vpop.f32.mrf.mxu0
    %v1650 = vadd.f32 %v1636, %v1649
    %1651 = vdwg.mxu0
    %v1652 = vmax.f32 %v1354, 0.0
    %v1653 = vmax.f32 %v1452, 0.0
    %v1654 = vmax.f32 %v1550, 0.0
    %v1655 = vmax.f32 %v1648, 0.0
    %v1656 = vmax.f32 %v1356, 0.0
    %v1657 = vmax.f32 %v1454, 0.0
    %v1658 = vmax.f32 %v1552, 0.0
    %v1659 = vmax.f32 %v1650, 0.0
    %v1660 = vpack.c.bf16 %v1656, %v1652
    %v1661 = vpack.c.bf16 %v1657, %v1653
    %v1662 = vpack.c.bf16 %v1658, %v1654
    %v1663 = vpack.c.bf16 %v1659, %v1655
    %v1664 = vld [vmem:[%s3] sm:$0xff]
    %v1665 = vld [vmem:[%s3 + $0x8] sm:$0xff]
    %v1666 = vld [vmem:[%s3 + $0x10] sm:$0xff]
    %v1667 = vld [vmem:[%s3 + $0x18] sm:$0xff]
    %v1668 = vld [vmem:[%s3 + $0x20] sm:$0xff]
    %v1669 = vld [vmem:[%s3 + $0x28] sm:$0xff]
    %v1670 = vld [vmem:[%s3 + $0x30] sm:$0xff]
    %v1671 = vld [vmem:[%s3 + $0x38] sm:$0xff]
    %v1672 = vld [vmem:[%s3 + $0x40] sm:$0xff]
    %v1673 = vld [vmem:[%s3 + $0x48] sm:$0xff]
    %v1674 = vld [vmem:[%s3 + $0x50] sm:$0xff]
    %v1675 = vld [vmem:[%s3 + $0x58] sm:$0xff]
    %v1676 = vld [vmem:[%s3 + $0x60] sm:$0xff]
    %v1677 = vld [vmem:[%s3 + $0x68] sm:$0xff]
    %v1678 = vld [vmem:[%s3 + $0x70] sm:$0xff]
    %v1679 = vld [vmem:[%s3 + $0x78] sm:$0xff]
    %v1680 = vld [vmem:[%s3 + $0x80] sm:$0xff]
    %v1681 = vld [vmem:[%s3 + $0x88] sm:$0xff]
    %v1682 = vld [vmem:[%s3 + $0x90] sm:$0xff]
    %v1683 = vld [vmem:[%s3 + $0x98] sm:$0xff]
    %v1684 = vld [vmem:[%s3 + $0xa0] sm:$0xff]
    %v1685 = vld [vmem:[%s3 + $0xa8] sm:$0xff]
    %v1686 = vld [vmem:[%s3 + $0xb0] sm:$0xff]
    %v1687 = vld [vmem:[%s3 + $0xb8] sm:$0xff]
    %v1688 = vld [vmem:[%s3 + $0xc0] sm:$0xff]
    %v1689 = vld [vmem:[%s3 + $0xc8] sm:$0xff]
    %v1690 = vld [vmem:[%s3 + $0xd0] sm:$0xff]
    %v1691 = vld [vmem:[%s3 + $0xd8] sm:$0xff]
    %v1692 = vld [vmem:[%s3 + $0xe0] sm:$0xff]
    %v1693 = vld [vmem:[%s3 + $0xe8] sm:$0xff]
    %v1694 = vld [vmem:[%s3 + $0xf0] sm:$0xff]
    %v1695 = vld [vmem:[%s3 + $0xf8] sm:$0xff]
    %v1696 = vld [vmem:[%s3 + $0x100] sm:$0xff]
    %v1697 = vld [vmem:[%s3 + $0x108] sm:$0xff]
    %v1698 = vld [vmem:[%s3 + $0x110] sm:$0xff]
    %v1699 = vld [vmem:[%s3 + $0x118] sm:$0xff]
    %v1700 = vld [vmem:[%s3 + $0x120] sm:$0xff]
    %v1701 = vld [vmem:[%s3 + $0x128] sm:$0xff]
    %v1702 = vld [vmem:[%s3 + $0x130] sm:$0xff]
    %v1703 = vld [vmem:[%s3 + $0x138] sm:$0xff]
    %v1704 = vld [vmem:[%s3 + $0x140] sm:$0xff]
    %v1705 = vld [vmem:[%s3 + $0x148] sm:$0xff]
    %v1706 = vld [vmem:[%s3 + $0x150] sm:$0xff]
    %v1707 = vld [vmem:[%s3 + $0x158] sm:$0xff]
    %v1708 = vld [vmem:[%s3 + $0x160] sm:$0xff]
    %v1709 = vld [vmem:[%s3 + $0x168] sm:$0xff]
    %v1710 = vld [vmem:[%s3 + $0x170] sm:$0xff]
    %v1711 = vld [vmem:[%s3 + $0x178] sm:$0xff]
    %v1712 = vld [vmem:[%s3 + $0x180] sm:$0xff]
    %v1713 = vld [vmem:[%s3 + $0x188] sm:$0xff]
    %v1714 = vld [vmem:[%s3 + $0x190] sm:$0xff]
    %v1715 = vld [vmem:[%s3 + $0x198] sm:$0xff]
    %v1716 = vld [vmem:[%s3 + $0x1a0] sm:$0xff]
    %v1717 = vld [vmem:[%s3 + $0x1a8] sm:$0xff]
    %v1718 = vld [vmem:[%s3 + $0x1b0] sm:$0xff]
    %v1719 = vld [vmem:[%s3 + $0x1b8] sm:$0xff]
    %v1720 = vld [vmem:[%s3 + $0x1c0] sm:$0xff]
    %v1721 = vld [vmem:[%s3 + $0x1c8] sm:$0xff]
    %v1722 = vld [vmem:[%s3 + $0x1d0] sm:$0xff]
    %v1723 = vld [vmem:[%s3 + $0x1d8] sm:$0xff]
    %v1724 = vld [vmem:[%s3 + $0x1e0] sm:$0xff]
    %v1725 = vld [vmem:[%s3 + $0x1e8] sm:$0xff]
    %v1726 = vld [vmem:[%s3 + $0x1f0] sm:$0xff]
    %v1727 = vld [vmem:[%s3 + $0x1f8] sm:$0xff]
    %v1728 = vld [vmem:[%s4] sm:$0x3]
    %v1730 = vperm.slane %v1728, 0
    %v1731 = vperm.slane %v1728, 1
    %v1798 = vunpack.c.l.b16 %v1664
    %v1799 = vunpack.c.h.b16 %v1664
    %v1800 = vunpack.c.l.b16 %v1665
    %v1801 = vunpack.c.h.b16 %v1665
    %v1802 = vunpack.c.l.b16 %v1666
    %v1803 = vunpack.c.h.b16 %v1666
    %v1804 = vunpack.c.l.b16 %v1667
    %v1805 = vunpack.c.h.b16 %v1667
    %v1806 = vunpack.c.l.b16 %v1668
    %v1807 = vunpack.c.h.b16 %v1668
    %v1808 = vunpack.c.l.b16 %v1669
    %v1809 = vunpack.c.h.b16 %v1669
    %v1810 = vunpack.c.l.b16 %v1670
    %v1811 = vunpack.c.h.b16 %v1670
    %v1812 = vunpack.c.l.b16 %v1671
    %v1813 = vunpack.c.h.b16 %v1671
    %v1814 = vunpack.c.l.b16 %v1672
    %v1815 = vunpack.c.h.b16 %v1672
    %v1816 = vunpack.c.l.b16 %v1673
    %v1817 = vunpack.c.h.b16 %v1673
    %v1818 = vunpack.c.l.b16 %v1674
    %v1819 = vunpack.c.h.b16 %v1674
    %v1820 = vunpack.c.l.b16 %v1675
    %v1821 = vunpack.c.h.b16 %v1675
    %v1822 = vunpack.c.l.b16 %v1676
    %v1823 = vunpack.c.h.b16 %v1676
    %v1824 = vunpack.c.l.b16 %v1677
    %v1825 = vunpack.c.h.b16 %v1677
    %v1826 = vunpack.c.l.b16 %v1678
    %v1827 = vunpack.c.h.b16 %v1678
    %v1828 = vunpack.c.l.b16 %v1679
    %v1829 = vunpack.c.h.b16 %v1679
    %v1830 = vunpack.c.l.b16 %v1680
    %v1831 = vunpack.c.h.b16 %v1680
    %v1832 = vunpack.c.l.b16 %v1681
    %v1833 = vunpack.c.h.b16 %v1681
    %v1834 = vunpack.c.l.b16 %v1682
    %v1835 = vunpack.c.h.b16 %v1682
    %v1836 = vunpack.c.l.b16 %v1683
    %v1837 = vunpack.c.h.b16 %v1683
    %v1838 = vunpack.c.l.b16 %v1684
    %v1839 = vunpack.c.h.b16 %v1684
    %v1840 = vunpack.c.l.b16 %v1685
    %v1841 = vunpack.c.h.b16 %v1685
    %v1842 = vunpack.c.l.b16 %v1686
    %v1843 = vunpack.c.h.b16 %v1686
    %v1844 = vunpack.c.l.b16 %v1687
    %v1845 = vunpack.c.h.b16 %v1687
    %v1846 = vunpack.c.l.b16 %v1688
    %v1847 = vunpack.c.h.b16 %v1688
    %v1848 = vunpack.c.l.b16 %v1689
    %v1849 = vunpack.c.h.b16 %v1689
    %v1850 = vunpack.c.l.b16 %v1690
    %v1851 = vunpack.c.h.b16 %v1690
    %v1852 = vunpack.c.l.b16 %v1691
    %v1853 = vunpack.c.h.b16 %v1691
    %v1854 = vunpack.c.l.b16 %v1692
    %v1855 = vunpack.c.h.b16 %v1692
    %v1856 = vunpack.c.l.b16 %v1693
    %v1857 = vunpack.c.h.b16 %v1693
    %v1858 = vunpack.c.l.b16 %v1694
    %v1859 = vunpack.c.h.b16 %v1694
    %v1860 = vunpack.c.l.b16 %v1695
    %v1861 = vunpack.c.h.b16 %v1695
    %v1862 = vunpack.c.l.b16 %v1696
    %v1863 = vunpack.c.h.b16 %v1696
    %v1864 = vunpack.c.l.b16 %v1697
    %v1865 = vunpack.c.h.b16 %v1697
    %v1866 = vunpack.c.l.b16 %v1698
    %v1867 = vunpack.c.h.b16 %v1698
    %v1868 = vunpack.c.l.b16 %v1699
    %v1869 = vunpack.c.h.b16 %v1699
    %v1870 = vunpack.c.l.b16 %v1700
    %v1871 = vunpack.c.h.b16 %v1700
    %v1872 = vunpack.c.l.b16 %v1701
    %v1873 = vunpack.c.h.b16 %v1701
    %v1874 = vunpack.c.l.b16 %v1702
    %v1875 = vunpack.c.h.b16 %v1702
    %v1876 = vunpack.c.l.b16 %v1703
    %v1877 = vunpack.c.h.b16 %v1703
    %v1878 = vunpack.c.l.b16 %v1704
    %v1879 = vunpack.c.h.b16 %v1704
    %v1880 = vunpack.c.l.b16 %v1705
    %v1881 = vunpack.c.h.b16 %v1705
    %v1882 = vunpack.c.l.b16 %v1706
    %v1883 = vunpack.c.h.b16 %v1706
    %v1884 = vunpack.c.l.b16 %v1707
    %v1885 = vunpack.c.h.b16 %v1707
    %v1886 = vunpack.c.l.b16 %v1708
    %v1887 = vunpack.c.h.b16 %v1708
    %v1888 = vunpack.c.l.b16 %v1709
    %v1889 = vunpack.c.h.b16 %v1709
    %v1890 = vunpack.c.l.b16 %v1710
    %v1891 = vunpack.c.h.b16 %v1710
    %v1892 = vunpack.c.l.b16 %v1711
    %v1893 = vunpack.c.h.b16 %v1711
    %v1894 = vunpack.c.l.b16 %v1712
    %v1895 = vunpack.c.h.b16 %v1712
    %v1896 = vunpack.c.l.b16 %v1713
    %v1897 = vunpack.c.h.b16 %v1713
    %v1898 = vunpack.c.l.b16 %v1714
    %v1899 = vunpack.c.h.b16 %v1714
    %v1900 = vunpack.c.l.b16 %v1715
    %v1901 = vunpack.c.h.b16 %v1715
    %v1902 = vunpack.c.l.b16 %v1716
    %v1903 = vunpack.c.h.b16 %v1716
    %v1904 = vunpack.c.l.b16 %v1717
    %v1905 = vunpack.c.h.b16 %v1717
    %v1906 = vunpack.c.l.b16 %v1718
    %v1907 = vunpack.c.h.b16 %v1718
    %v1908 = vunpack.c.l.b16 %v1719
    %v1909 = vunpack.c.h.b16 %v1719
    %v1910 = vunpack.c.l.b16 %v1720
    %v1911 = vunpack.c.h.b16 %v1720
    %v1912 = vunpack.c.l.b16 %v1721
    %v1913 = vunpack.c.h.b16 %v1721
    %v1914 = vunpack.c.l.b16 %v1722
    %v1915 = vunpack.c.h.b16 %v1722
    %v1916 = vunpack.c.l.b16 %v1723
    %v1917 = vunpack.c.h.b16 %v1723
    %v1918 = vunpack.c.l.b16 %v1724
    %v1919 = vunpack.c.h.b16 %v1724
    %v1920 = vunpack.c.l.b16 %v1725
    %v1921 = vunpack.c.h.b16 %v1725
    %v1922 = vunpack.c.l.b16 %v1726
    %v1923 = vunpack.c.h.b16 %v1726
    %v1924 = vunpack.c.l.b16 %v1727
    %v1925 = vunpack.c.h.b16 %v1727
    %v1926 = vpack.c.b16 %v1800, %v1798
    %v1927 = vpack.c.b16 %v1801, %v1799
    %v1928 = vpack.c.b16 %v1804, %v1802
    %v1929 = vpack.c.b16 %v1805, %v1803
    %v1930 = vpack.c.b16 %v1808, %v1806
    %v1931 = vpack.c.b16 %v1809, %v1807
    %v1932 = vpack.c.b16 %v1812, %v1810
    %v1933 = vpack.c.b16 %v1813, %v1811
    %v1934 = vpack.c.b16 %v1816, %v1814
    %v1935 = vpack.c.b16 %v1817, %v1815
    %v1936 = vpack.c.b16 %v1820, %v1818
    %v1937 = vpack.c.b16 %v1821, %v1819
    %v1938 = vpack.c.b16 %v1824, %v1822
    %v1939 = vpack.c.b16 %v1825, %v1823
    %v1940 = vpack.c.b16 %v1828, %v1826
    %v1941 = vpack.c.b16 %v1829, %v1827
    %v1942 = vpack.c.b16 %v1832, %v1830
    %v1943 = vpack.c.b16 %v1833, %v1831
    %v1944 = vpack.c.b16 %v1836, %v1834
    %v1945 = vpack.c.b16 %v1837, %v1835
    %v1946 = vpack.c.b16 %v1840, %v1838
    %v1947 = vpack.c.b16 %v1841, %v1839
    %v1948 = vpack.c.b16 %v1844, %v1842
    %v1949 = vpack.c.b16 %v1845, %v1843
    %v1950 = vpack.c.b16 %v1848, %v1846
    %v1951 = vpack.c.b16 %v1849, %v1847
    %v1952 = vpack.c.b16 %v1852, %v1850
    %v1953 = vpack.c.b16 %v1853, %v1851
    %v1954 = vpack.c.b16 %v1856, %v1854
    %v1955 = vpack.c.b16 %v1857, %v1855
    %v1956 = vpack.c.b16 %v1860, %v1858
    %v1957 = vpack.c.b16 %v1861, %v1859
    %v1958 = vpack.c.b16 %v1864, %v1862
    %v1959 = vpack.c.b16 %v1865, %v1863
    %v1960 = vpack.c.b16 %v1868, %v1866
    %v1961 = vpack.c.b16 %v1869, %v1867
    %v1962 = vpack.c.b16 %v1872, %v1870
    %v1963 = vpack.c.b16 %v1873, %v1871
    %v1964 = vpack.c.b16 %v1876, %v1874
    %v1965 = vpack.c.b16 %v1877, %v1875
    %v1966 = vpack.c.b16 %v1880, %v1878
    %v1967 = vpack.c.b16 %v1881, %v1879
    %v1968 = vpack.c.b16 %v1884, %v1882
    %v1969 = vpack.c.b16 %v1885, %v1883
    %v1970 = vpack.c.b16 %v1888, %v1886
    %v1971 = vpack.c.b16 %v1889, %v1887
    %v1972 = vpack.c.b16 %v1892, %v1890
    %v1973 = vpack.c.b16 %v1893, %v1891
    %v1974 = vpack.c.b16 %v1896, %v1894
    %v1975 = vpack.c.b16 %v1897, %v1895
    %v1976 = vpack.c.b16 %v1900, %v1898
    %v1977 = vpack.c.b16 %v1901, %v1899
    %v1978 = vpack.c.b16 %v1904, %v1902
    %v1979 = vpack.c.b16 %v1905, %v1903
    %v1980 = vpack.c.b16 %v1908, %v1906
    %v1981 = vpack.c.b16 %v1909, %v1907
    %v1982 = vpack.c.b16 %v1912, %v1910
    %v1983 = vpack.c.b16 %v1913, %v1911
    %v1984 = vpack.c.b16 %v1916, %v1914
    %v1985 = vpack.c.b16 %v1917, %v1915
    %v1986 = vpack.c.b16 %v1920, %v1918
    %v1987 = vpack.c.b16 %v1921, %v1919
    %v1988 = vpack.c.b16 %v1924, %v1922
    %v1989 = vpack.c.b16 %v1925, %v1923
    %2054 = vmatpush.bf16.msra.mxu0 %v1940
    %2055 = vmatpush.bf16.msra.mxu0 %v1938
    %2056 = vmatpush.bf16.msra.mxu0 %v1936
    %2057 = vmatpush.bf16.msra.mxu0 %v1934
    %2058 = vmatpush.bf16.msra.mxu0 %v1932
    %2059 = vmatpush.bf16.msra.mxu0 %v1930
    %2060 = vmatpush.bf16.msra.mxu0 %v1928
    %2061 = vmatpush.bf16.msra.mxu0 %v1926
    %2062 = vmatmul.bf16.gmra.mxu0 %v1660
    %v2063 = vpop.f32.mrf.mxu0
    %v2064 = vadd.f32 %v1730, %v2063
    %v2065 = vpop.f32.mrf.mxu0
    %v2066 = vadd.f32 %v1730, %v2065
    %2067 = vdwg.mxu0
    %2068 = vmatpush.bf16.msra.mxu0 %v1956
    %2069 = vmatpush.bf16.msra.mxu0 %v1954
    %2070 = vmatpush.bf16.msra.mxu0 %v1952
    %2071 = vmatpush.bf16.msra.mxu0 %v1950
    %2072 = vmatpush.bf16.msra.mxu0 %v1948
    %2073 = vmatpush.bf16.msra.mxu0 %v1946
    %2074 = vmatpush.bf16.msra.mxu0 %v1944
    %2075 = vmatpush.bf16.msra.mxu0 %v1942
    %2076 = vmatmul.bf16.gmra.mxu0 %v1661
    %v2077 = vpop.f32.mrf.mxu0
    %v2078 = vadd.f32 %v2064, %v2077
    %v2079 = vpop.f32.mrf.mxu0
    %v2080 = vadd.f32 %v2066, %v2079
    %2081 = vdwg.mxu0
    %2082 = vmatpush.bf16.msra.mxu0 %v1972
    %2083 = vmatpush.bf16.msra.mxu0 %v1970
    %2084 = vmatpush.bf16.msra.mxu0 %v1968
    %2085 = vmatpush.bf16.msra.mxu0 %v1966
    %2086 = vmatpush.bf16.msra.mxu0 %v1964
    %2087 = vmatpush.bf16.msra.mxu0 %v1962
    %2088 = vmatpush.bf16.msra.mxu0 %v1960
    %2089 = vmatpush.bf16.msra.mxu0 %v1958
    %2090 = vmatmul.bf16.gmra.mxu0 %v1662
    %v2091 = vpop.f32.mrf.mxu0
    %v2092 = vadd.f32 %v2078, %v2091
    %v2093 = vpop.f32.mrf.mxu0
    %v2094 = vadd.f32 %v2080, %v2093
    %2095 = vdwg.mxu0
    %2096 = vmatpush.bf16.msra.mxu0 %v1988
    %2097 = vmatpush.bf16.msra.mxu0 %v1986
    %2098 = vmatpush.bf16.msra.mxu0 %v1984
    %2099 = vmatpush.bf16.msra.mxu0 %v1982
    %2100 = vmatpush.bf16.msra.mxu0 %v1980
    %2101 = vmatpush.bf16.msra.mxu0 %v1978
    %2102 = vmatpush.bf16.msra.mxu0 %v1976
    %2103 = vmatpush.bf16.msra.mxu0 %v1974
    %2104 = vmatmul.bf16.gmra.mxu0 %v1663
    %v2105 = vpop.f32.mrf.mxu0
    %v2106 = vadd.f32 %v2092, %v2105
    %v2107 = vpop.f32.mrf.mxu0
    %v2108 = vadd.f32 %v2094, %v2107
    %2109 = vdwg.mxu0
    %2110 = vmatpush.bf16.msra.mxu0 %v1941
    %2111 = vmatpush.bf16.msra.mxu0 %v1939
    %2112 = vmatpush.bf16.msra.mxu0 %v1937
    %2113 = vmatpush.bf16.msra.mxu0 %v1935
    %2114 = vmatpush.bf16.msra.mxu0 %v1933
    %2115 = vmatpush.bf16.msra.mxu0 %v1931
    %2116 = vmatpush.bf16.msra.mxu0 %v1929
    %2117 = vmatpush.bf16.msra.mxu0 %v1927
    %2118 = vmatmul.bf16.gmra.mxu0 %v1660
    %v2119 = vpop.f32.mrf.mxu0
    %v2120 = vadd.f32 %v1731, %v2119
    %v2121 = vpop.f32.mrf.mxu0
    %v2122 = vadd.f32 %v1731, %v2121
    %2123 = vdwg.mxu0
    %2124 = vmatpush.bf16.msra.mxu0 %v1957
    %2125 = vmatpush.bf16.msra.mxu0 %v1955
    %2126 = vmatpush.bf16.msra.mxu0 %v1953
    %2127 = vmatpush.bf16.msra.mxu0 %v1951
    %2128 = vmatpush.bf16.msra.mxu0 %v1949
    %2129 = vmatpush.bf16.msra.mxu0 %v1947
    %2130 = vmatpush.bf16.msra.mxu0 %v1945
    %2131 = vmatpush.bf16.msra.mxu0 %v1943
    %2132 = vmatmul.bf16.gmra.mxu0 %v1661
    %v2133 = vpop.f32.mrf.mxu0
    %v2134 = vadd.f32 %v2120, %v2133
    %v2135 = vpop.f32.mrf.mxu0
    %v2136 = vadd.f32 %v2122, %v2135
    %2137 = vdwg.mxu0
    %2138 = vmatpush.bf16.msra.mxu0 %v1973
    %2139 = vmatpush.bf16.msra.mxu0 %v1971
    %2140 = vmatpush.bf16.msra.mxu0 %v1969
    %2141 = vmatpush.bf16.msra.mxu0 %v1967
    %2142 = vmatpush.bf16.msra.mxu0 %v1965
    %2143 = vmatpush.bf16.msra.mxu0 %v1963
    %2144 = vmatpush.bf16.msra.mxu0 %v1961
    %2145 = vmatpush.bf16.msra.mxu0 %v1959
    %2146 = vmatmul.bf16.gmra.mxu0 %v1662
    %v2147 = vpop.f32.mrf.mxu0
    %v2148 = vadd.f32 %v2134, %v2147
    %v2149 = vpop.f32.mrf.mxu0
    %v2150 = vadd.f32 %v2136, %v2149
    %2151 = vdwg.mxu0
    %2152 = vmatpush.bf16.msra.mxu0 %v1989
    %2153 = vmatpush.bf16.msra.mxu0 %v1987
    %2154 = vmatpush.bf16.msra.mxu0 %v1985
    %2155 = vmatpush.bf16.msra.mxu0 %v1983
    %2156 = vmatpush.bf16.msra.mxu0 %v1981
    %2157 = vmatpush.bf16.msra.mxu0 %v1979
    %2158 = vmatpush.bf16.msra.mxu0 %v1977
    %2159 = vmatpush.bf16.msra.mxu0 %v1975
    %2160 = vmatmul.bf16.gmra.mxu0 %v1663
    %v2161 = vpop.f32.mrf.mxu0
    %v2162 = vadd.f32 %v2148, %v2161
    %v2163 = vpop.f32.mrf.mxu0
    %v2164 = vadd.f32 %v2150, %v2163
    %2165 = vdwg.mxu0
    %v2166 = vmax.f32 %v2106, 0.0
    %v2167 = vmax.f32 %v2162, 0.0
    %v2168 = vmax.f32 %v2108, 0.0
    %v2169 = vmax.f32 %v2164, 0.0
    %v2170 = vpack.c.bf16 %v2168, %v2166
    %v2171 = vpack.c.bf16 %v2169, %v2167
    %v2172 = vld [vmem:[%s5] sm:$0xf]
    %v2173 = vld [vmem:[%s5 + $0x4] sm:$0xf]
    %v2174 = vld [vmem:[%s5 + $0x8] sm:$0xf]
    %v2175 = vld [vmem:[%s5 + $0xc] sm:$0xf]
    %v2176 = vld [vmem:[%s5 + $0x10] sm:$0xf]
    %v2177 = vld [vmem:[%s5 + $0x14] sm:$0xf]
    %v2178 = vld [vmem:[%s5 + $0x18] sm:$0xf]
    %v2179 = vld [vmem:[%s5 + $0x1c] sm:$0xf]
    %v2180 = vld [vmem:[%s5 + $0x20] sm:$0xf]
    %v2181 = vld [vmem:[%s5 + $0x24] sm:$0xf]
    %v2182 = vld [vmem:[%s5 + $0x28] sm:$0xf]
    %v2183 = vld [vmem:[%s5 + $0x2c] sm:$0xf]
    %v2184 = vld [vmem:[%s5 + $0x30] sm:$0xf]
    %v2185 = vld [vmem:[%s5 + $0x34] sm:$0xf]
    %v2186 = vld [vmem:[%s5 + $0x38] sm:$0xf]
    %v2187 = vld [vmem:[%s5 + $0x3c] sm:$0xf]
    %v2188 = vld [vmem:[%s5 + $0x40] sm:$0xf]
    %v2189 = vld [vmem:[%s5 + $0x44] sm:$0xf]
    %v2190 = vld [vmem:[%s5 + $0x48] sm:$0xf]
    %v2191 = vld [vmem:[%s5 + $0x4c] sm:$0xf]
    %v2192 = vld [vmem:[%s5 + $0x50] sm:$0xf]
    %v2193 = vld [vmem:[%s5 + $0x54] sm:$0xf]
    %v2194 = vld [vmem:[%s5 + $0x58] sm:$0xf]
    %v2195 = vld [vmem:[%s5 + $0x5c] sm:$0xf]
    %v2196 = vld [vmem:[%s5 + $0x60] sm:$0xf]
    %v2197 = vld [vmem:[%s5 + $0x64] sm:$0xf]
    %v2198 = vld [vmem:[%s5 + $0x68] sm:$0xf]
    %v2199 = vld [vmem:[%s5 + $0x6c] sm:$0xf]
    %v2200 = vld [vmem:[%s5 + $0x70] sm:$0xf]
    %v2201 = vld [vmem:[%s5 + $0x74] sm:$0xf]
    %v2202 = vld [vmem:[%s5 + $0x78] sm:$0xf]
    %v2203 = vld [vmem:[%s5 + $0x7c] sm:$0xf]
    %v2204 = vld [vmem:[%s6] sm:$0x1]
    %v2206 = vperm.slane %v2204, 0
    %v2240 = vunpack.c.l.b16 %v2172
    %v2241 = vunpack.c.l.b16 %v2173
    %v2242 = vunpack.c.l.b16 %v2174
    %v2243 = vunpack.c.l.b16 %v2175
    %v2244 = vunpack.c.l.b16 %v2176
    %v2245 = vunpack.c.l.b16 %v2177
    %v2246 = vunpack.c.l.b16 %v2178
    %v2247 = vunpack.c.l.b16 %v2179
    %v2248 = vunpack.c.l.b16 %v2180
    %v2249 = vunpack.c.l.b16 %v2181
    %v2250 = vunpack.c.l.b16 %v2182
    %v2251 = vunpack.c.l.b16 %v2183
    %v2252 = vunpack.c.l.b16 %v2184
    %v2253 = vunpack.c.l.b16 %v2185
    %v2254 = vunpack.c.l.b16 %v2186
    %v2255 = vunpack.c.l.b16 %v2187
    %v2256 = vunpack.c.l.b16 %v2188
    %v2257 = vunpack.c.l.b16 %v2189
    %v2258 = vunpack.c.l.b16 %v2190
    %v2259 = vunpack.c.l.b16 %v2191
    %v2260 = vunpack.c.l.b16 %v2192
    %v2261 = vunpack.c.l.b16 %v2193
    %v2262 = vunpack.c.l.b16 %v2194
    %v2263 = vunpack.c.l.b16 %v2195
    %v2264 = vunpack.c.l.b16 %v2196
    %v2265 = vunpack.c.l.b16 %v2197
    %v2266 = vunpack.c.l.b16 %v2198
    %v2267 = vunpack.c.l.b16 %v2199
    %v2268 = vunpack.c.l.b16 %v2200
    %v2269 = vunpack.c.l.b16 %v2201
    %v2270 = vunpack.c.l.b16 %v2202
    %v2271 = vunpack.c.l.b16 %v2203
    %v2272 = vpack.c.b16 %v2241, %v2240
    %v2273 = vpack.c.b16 %v2243, %v2242
    %v2274 = vpack.c.b16 %v2245, %v2244
    %v2275 = vpack.c.b16 %v2247, %v2246
    %v2276 = vpack.c.b16 %v2249, %v2248
    %v2277 = vpack.c.b16 %v2251, %v2250
    %v2278 = vpack.c.b16 %v2253, %v2252
    %v2279 = vpack.c.b16 %v2255, %v2254
    %v2280 = vpack.c.b16 %v2257, %v2256
    %v2281 = vpack.c.b16 %v2259, %v2258
    %v2282 = vpack.c.b16 %v2261, %v2260
    %v2283 = vpack.c.b16 %v2263, %v2262
    %v2284 = vpack.c.b16 %v2265, %v2264
    %v2285 = vpack.c.b16 %v2267, %v2266
    %v2286 = vpack.c.b16 %v2269, %v2268
    %v2287 = vpack.c.b16 %v2271, %v2270
    %2304 = vmatpush.bf16.msra.mxu0 %v2279
    %2305 = vmatpush.bf16.msra.mxu0 %v2278
    %2306 = vmatpush.bf16.msra.mxu0 %v2277
    %2307 = vmatpush.bf16.msra.mxu0 %v2276
    %2308 = vmatpush.bf16.msra.mxu0 %v2275
    %2309 = vmatpush.bf16.msra.mxu0 %v2274
    %2310 = vmatpush.bf16.msra.mxu0 %v2273
    %2311 = vmatpush.bf16.msra.mxu0 %v2272
    %2312 = vmatmul.bf16.gmra.mxu0 %v2170
    %v2313 = vpop.f32.mrf.mxu0
    %v2314 = vadd.f32 %v2206, %v2313
    %v2315 = vpop.f32.mrf.mxu0
    %v2316 = vadd.f32 %v2206, %v2315
    %2317 = vdwg.mxu0
    %2318 = vmatpush.bf16.msra.mxu0 %v2287
    %2319 = vmatpush.bf16.msra.mxu0 %v2286
    %2320 = vmatpush.bf16.msra.mxu0 %v2285
    %2321 = vmatpush.bf16.msra.mxu0 %v2284
    %2322 = vmatpush.bf16.msra.mxu0 %v2283
    %2323 = vmatpush.bf16.msra.mxu0 %v2282
    %2324 = vmatpush.bf16.msra.mxu0 %v2281
    %2325 = vmatpush.bf16.msra.mxu0 %v2280
    %2326 = vmatmul.bf16.gmra.mxu0 %v2171
    %v2327 = vpop.f32.mrf.mxu0
    %v2328 = vadd.f32 %v2314, %v2327
    %v2329 = vpop.f32.mrf.mxu0
    %v2330 = vadd.f32 %v2316, %v2329
    %2331 = vdwg.mxu0
    %v2332 = vmax.f32 %v2328, 0.0
    %v2333 = vmax.f32 %v2330, 0.0
    %v2334 = vpack.c.bf16 %v2333, %v2332
    %v2335 = vld [vmem:[%s7] sm:$0xf]
    %v2336 = vld [vmem:[%s7 + $0x4] sm:$0xf]
    %v2337 = vld [vmem:[%s7 + $0x8] sm:$0xf]
    %v2338 = vld [vmem:[%s7 + $0xc] sm:$0xf]
    %v2339 = vld [vmem:[%s7 + $0x10] sm:$0xf]
    %v2340 = vld [vmem:[%s7 + $0x14] sm:$0xf]
    %v2341 = vld [vmem:[%s7 + $0x18] sm:$0xf]
    %v2342 = vld [vmem:[%s7 + $0x1c] sm:$0xf]
    %v2343 = vld [vmem:[%s7 + $0x20] sm:$0xf]
    %v2344 = vld [vmem:[%s7 + $0x24] sm:$0xf]
    %v2345 = vld [vmem:[%s7 + $0x28] sm:$0xf]
    %v2346 = vld [vmem:[%s7 + $0x2c] sm:$0xf]
    %v2347 = vld [vmem:[%s7 + $0x30] sm:$0xf]
    %v2348 = vld [vmem:[%s7 + $0x34] sm:$0xf]
    %v2349 = vld [vmem:[%s7 + $0x38] sm:$0xf]
    %v2350 = vld [vmem:[%s7 + $0x3c] sm:$0xf]
    %v2351 = vld [vmem:[%s8] sm:$0x1]
    %v2353 = vperm.slane %v2351, 0
    %v2371 = vunpack.c.l.b16 %v2335
    %v2372 = vunpack.c.l.b16 %v2336
    %v2373 = vunpack.c.l.b16 %v2337
    %v2374 = vunpack.c.l.b16 %v2338
    %v2375 = vunpack.c.l.b16 %v2339
    %v2376 = vunpack.c.l.b16 %v2340
    %v2377 = vunpack.c.l.b16 %v2341
    %v2378 = vunpack.c.l.b16 %v2342
    %v2379 = vunpack.c.l.b16 %v2343
    %v2380 = vunpack.c.l.b16 %v2344
    %v2381 = vunpack.c.l.b16 %v2345
    %v2382 = vunpack.c.l.b16 %v2346
    %v2383 = vunpack.c.l.b16 %v2347
    %v2384 = vunpack.c.l.b16 %v2348
    %v2385 = vunpack.c.l.b16 %v2349
    %v2386 = vunpack.c.l.b16 %v2350
    %v2387 = vpack.c.b16 %v2372, %v2371
    %v2388 = vpack.c.b16 %v2374, %v2373
    %v2389 = vpack.c.b16 %v2376, %v2375
    %v2390 = vpack.c.b16 %v2378, %v2377
    %v2391 = vpack.c.b16 %v2380, %v2379
    %v2392 = vpack.c.b16 %v2382, %v2381
    %v2393 = vpack.c.b16 %v2384, %v2383
    %v2394 = vpack.c.b16 %v2386, %v2385
    %2403 = vmatpush.bf16.msra.mxu0 %v2394
    %2404 = vmatpush.bf16.msra.mxu0 %v2393
    %2405 = vmatpush.bf16.msra.mxu0 %v2392
    %2406 = vmatpush.bf16.msra.mxu0 %v2391
    %2407 = vmatpush.bf16.msra.mxu0 %v2390
    %2408 = vmatpush.bf16.msra.mxu0 %v2389
    %2409 = vmatpush.bf16.msra.mxu0 %v2388
    %2410 = vmatpush.bf16.msra.mxu0 %v2387
    %2411 = vmatmul.bf16.gmra.mxu0 %v2334
    %v2412 = vpop.f32.mrf.mxu0
    %v2413 = vadd.f32 %v2353, %v2412
    %v2414 = vpop.f32.mrf.mxu0
    %v2415 = vadd.f32 %v2353, %v2414
    %2416 = vdwg.mxu0
    %2417 = vmax.xlane.f32.xlu0 %v2413
    %v2418 = vpop.xlane.xlu0 %2417
    %2419 = vmax.xlane.f32.xlu0 %v2415
    %v2420 = vpop.xlane.xlu0 %2419
    %v2421 = vsub.f32 %v2413, %v2418
    %v2422 = vsub.f32 %v2415, %v2420
    %v2423 = vmul.f32 %v2421, 1.442695
    %v2424 = vpow.pop %v2423
    %v2425 = vmul.f32 %v2422, 1.442695
    %v2426 = vpow.pop %v2425
    %2427 = vadd.xlane.f32.xlu0 %v2424
    %v2428 = vpop.xlane.xlu0 %2427
    %2429 = vadd.xlane.f32.xlu0 %v2426
    %v2430 = vpop.xlane.xlu0 %2429
    %v2431 = vlog2.pop %v2428
    %v2432 = vmul.f32 %v2431, 0.6931472
    %v2433 = vlog2.pop %v2430
    %v2434 = vmul.f32 %v2433, 0.6931472
    %v2435 = vsub.f32 %v2421, %v2432
    %v2436 = vsub.f32 %v2422, %v2434
    %2437 = vst [vmem:[%s9] sm:$0xff] %v2435
    %2438 = vst [vmem:[%s9 + $0x8] sm:$0xff] %v2436
    // Predicated region
    $region42: #{net_forward.1} parent=1 // pred_check
      _
    $region43: #{net_forward.1} parent=1 // pred_check_branch
      %2440 = sbr.rel (0) target = $region45
    $region44: #{net_forward.1} parent=1 // pred_region
      _
    $region45: #{net_forward.1} parent=1 // pred_fallthru
      _
    // Predicated region
    $region46: #{net_forward.1} parent=1 // pred_check
      _
    $region47: #{net_forward.1} parent=1 // pred_check_branch
      %2442 = sbr.rel (0) target = $region49
    $region48: #{net_forward.1} parent=1 // pred_region
      _
    $region49: #{net_forward.1} parent=1 // pred_fallthru
      _
    %2443 = vsyncpa [#allocation3], 1

</llo_original>
